<compile_context>
chip_gen: v6e
topology: v6e:2x2x1
jax: 0.10.0
libtpu: 0.0.40
codegen_flags: <defaults>
</compile_context>

<pallas_src>
import math

import jax
import jax.numpy as jnp
from jax.experimental import pallas as pl
from jax.experimental.pallas import tpu as pltpu  # noqa: F401  (TPU backend)

# ----------------------------- configuration -------------------------------
B = 2                 # batch
C = 4                 # latent channels (SD latent space)
H = W = 16            # latent spatial
HW = H * W            # 256 -> lane axis
S = 8                 # "tokenizer max length" stand-in
D = 32                # text / unet hidden width
VOCAB = 64
NUM_TRAIN_TIMESTEPS = 1000
NOISE_OFFSET = 0.1
LATENT_SCALE = 0.18215
ATTN_SCALE = 1.0 / math.sqrt(D)


# ----------------------- DDPM scheduler constants ---------------------------
def make_alphas_cumprod():
    # SD "scaled_linear" beta schedule.
    beta_start, beta_end = 0.00085, 0.012
    betas = jnp.linspace(beta_start ** 0.5, beta_end ** 0.5,
                         NUM_TRAIN_TIMESTEPS, dtype=jnp.float32) ** 2
    return jnp.cumprod(1.0 - betas)


# ------------------------------ fused kernel --------------------------------
def _fused_kernel(lat_ref, base_ref, off_ref, sacp_ref, somacp_ref,
                  tokemb_ref, temb_ref,
                  te_w1_ref, te_b1_ref, te_w2_ref, te_b2_ref,
                  w_in_t_ref, b_in_ref, wq_t_ref, wk_ref, wv_ref, wo_t_ref,
                  w_out_t_ref, b_out_ref,
                  pred_ref, noise_ref):
    f32 = jnp.float32

    # ---- 1) latent scaling, offset-noise, DDPM add_noise (whole batch) ----
    lat = lat_ref[...] * LATENT_SCALE                       # (B, C, HW)
    noise = base_ref[...] + NOISE_OFFSET * off_ref[...]     # (B,C,1) lane-broadcast
    noisy = sacp_ref[...] * lat + somacp_ref[...] * noise   # (B,1,1) broadcast
    noise_ref[...] = noise                                  # epsilon target

    # ---- 2) synthetic text encoder: LN -> Linear -> GELU -> Linear --------
    # TODO(synk): stands in for the full CLIPTextModel transformer stack.
    x = tokemb_ref[...]                                     # (B*S, D)
    mu = jnp.mean(x, axis=-1, keepdims=True)
    var = jnp.mean((x - mu) ** 2, axis=-1, keepdims=True)
    xn = (x - mu) * jax.lax.rsqrt(var + 1e-5)
    hh = jnp.dot(xn, te_w1_ref[...], preferred_element_type=f32) + te_b1_ref[...]
    # TODO(synk): tanh-approx GELU; torch.nn.GELU default is exact erf.
    hh = jax.nn.gelu(hh)
    ctx = jnp.dot(hh, te_w2_ref[...], preferred_element_type=f32) + te_b2_ref[...]

    # ---- 3) synthetic conditional UNet, transposed (feat, HW) layout ------
    # TODO(synk): stands in for UNet2DConditionModel (down/mid/up blocks).
    for b in range(B):                                      # B=2, static unroll
        xt = noisy[b]                                       # (C, HW)
        ht = jnp.dot(w_in_t_ref[...], xt, preferred_element_type=f32)   # (D, HW)
        ht = ht + b_in_ref[...] + temb_ref[b]               # (D,1) column adds
        ht = jax.nn.silu(ht)

        qt = jnp.dot(wq_t_ref[...], ht, preferred_element_type=f32)     # (D, HW)
        ctx_b = ctx[b * S:(b + 1) * S, :]                                # (S, D)
        k = jnp.dot(ctx_b, wk_ref[...], preferred_element_type=f32)     # (S, D)
        v = jnp.dot(ctx_b, wv_ref[...], preferred_element_type=f32)     # (S, D)

        # scores^T: (S, HW); softmax over keys = sublane axis
        scores_t = jnp.dot(k, qt, preferred_element_type=f32) * ATTN_SCALE
        scores_t = scores_t - jnp.max(scores_t, axis=0, keepdims=True)
        p = jnp.exp(scores_t)
        p = p * pl.reciprocal(jnp.sum(p, axis=0, keepdims=True), approx=True)

        # attn^T (D, HW) = V^T @ P^T  (contract over S, dim 0 of both)
        attn_t = jax.lax.dot_general(v, p, (((0,), (0,)), ((), ())),
                                     preferred_element_type=f32)

        ht = ht + jnp.dot(wo_t_ref[...], attn_t, preferred_element_type=f32)
        # lane-dense (C, HW) store straight into the NCHW-compatible output
        pred_ref[b] = (jnp.dot(w_out_t_ref[...], ht, preferred_element_type=f32)
                       + b_out_ref[...])


def fused_forward_pallas(lat3, base3, off3, sacp, somacp, tokemb2, temb3, p):
    # Grid-less call: every operand is a full-array VMEM block (total working
    # set < 100 KB, fine on v5e/v6e/v7x).  Outputs are lane-dense (B, C, HW).
    return pl.pallas_call(
        _fused_kernel,
        out_shape=(jax.ShapeDtypeStruct((B, C, HW), jnp.float32),   # model_pred
                   jax.ShapeDtypeStruct((B, C, HW), jnp.float32)),  # noise (target)
    )(lat3, base3, off3, sacp, somacp, tokemb2, temb3,
      p["te_w1"], p["te_b1"], p["te_w2"], p["te_b2"],
      p["u_w_in_t"], p["u_b_in"], p["u_wq_t"], p["u_wk"], p["u_wv"], p["u_wo_t"],
      p["u_w_out_t"], p["u_b_out"])


# --------------------------- parameter init ---------------------------------
def init_params(key):
    ks = jax.random.split(key, 12)
    n = lambda k, shape, scale: scale * jax.random.normal(k, shape, jnp.float32)
    return {
        "alphas_cumprod": make_alphas_cumprod(),
        # text encoder (rows-on-sublanes layout)
        "tok_embed": n(ks[0], (VOCAB, D), 0.02),
        "pos_embed": n(ks[1], (S, D), 0.02),
        "te_w1": n(ks[2], (D, D), 1.0 / math.sqrt(D)),
        "te_b1": jnp.zeros((1, D), jnp.float32),
        "te_w2": n(ks[3], (D, D), 1.0 / math.sqrt(D)),
        "te_b2": jnp.zeros((1, D), jnp.float32),
        # unet weights stored pre-transposed for the (feat, HW) layout
        "u_w_in_t": n(ks[4], (D, C), 1.0 / math.sqrt(C)),
        "u_b_in": jnp.zeros((D, 1), jnp.float32),
        "u_wq_t": n(ks[5], (D, D), 1.0 / math.sqrt(D)),
        "u_wk": n(ks[6], (D, D), 1.0 / math.sqrt(D)),
        "u_wv": n(ks[7], (D, D), 1.0 / math.sqrt(D)),
        "u_wo_t": n(ks[8], (D, D), 1.0 / math.sqrt(D)),
        "u_w_out_t": n(ks[9], (C, D), 1.0 / math.sqrt(D)),
        "u_b_out": jnp.zeros((C, 1), jnp.float32),
    }


# ----------------------------- glue helpers ----------------------------------
def tokenize_classes(classes):
    # Deterministic stand-in for CLIPTokenizer on the prompt strings.
    return (classes[:, None] * 7 + jnp.arange(S, dtype=jnp.int32)[None, :] + 1) % VOCAB


def timestep_embedding(t):
    # Sinusoidal timestep embedding (as in diffusers), dim = D.
    half = D // 2
    freqs = jnp.exp(-math.log(10000.0) * jnp.arange(half, dtype=jnp.float32) / half)
    args = t.astype(jnp.float32)[:, None] * freqs[None, :]
    return jnp.concatenate([jnp.sin(args), jnp.cos(args)], axis=-1)     # (B, D)


# ------------------------------ forward --------------------------------------
@jax.jit
def forward(latents_raw, classes, params, key):
    k_noise, k_off, k_t = jax.random.split(key, 3)
    base_noise = jax.random.normal(k_noise, (B, C, HW), jnp.float32)
    offset_noise = jax.random.normal(k_off, (B, C, 1), jnp.float32)
    # torch uses int64 (.long()); int32 is identical in value range here.
    timesteps = jax.random.randint(k_t, (B,), 0, NUM_TRAIN_TIMESTEPS, dtype=jnp.int32)

    acp = params["alphas_cumprod"]
    sqrt_acp = jnp.sqrt(acp[timesteps]).reshape(B, 1, 1).astype(jnp.float32)
    sqrt_omacp = jnp.sqrt(1.0 - acp[timesteps]).reshape(B, 1, 1).astype(jnp.float32)

    # "tokenizer" + token embedding lookup (gather stays in XLA)
    token_ids = tokenize_classes(classes)                                 # (B, S)
    token_embeds = (jnp.take(params["tok_embed"], token_ids, axis=0)
                    + params["pos_embed"][None]).reshape(B * S, D)        # (B*S, D)

    t_emb = timestep_embedding(timesteps)[:, :, None]                     # (B, D, 1)

    lat3 = latents_raw.reshape(B, C, HW)                                  # NCHW -> (B,C,HW), free

    model_pred3, noise3 = fused_forward_pallas(
        lat3, base_noise, offset_noise, sqrt_acp, sqrt_omacp,
        token_embeds, t_emb, params)

    # prediction_type == 'epsilon'  ->  target = noise
    model_pred = model_pred3.reshape(B, C, H, W)
    target = noise3.reshape(B, C, H, W)
    return model_pred, target, timesteps


# -------------------------------- main ---------------------------------------
if __name__ == "__main__":
    key = jax.random.PRNGKey(0)
    k_lat, k_cls, k_param, k_fwd = jax.random.split(key, 4)

    batch = {
        "latents": jax.random.normal(k_lat, (B, C, H, W), jnp.float32),   # NCHW
        "classes": jax.random.randint(k_cls, (B,), 0, 5, dtype=jnp.int32),
    }
    params = init_params(k_param)

    model_pred, target, timesteps = forward(
        batch["latents"], batch["classes"], params, k_fwd)
    jax.block_until_ready((model_pred, target, timesteps))

    bsz = batch["latents"].shape[0]
    assert model_pred.shape == (B, C, H, W)
    assert target.shape == (B, C, H, W)
    assert timesteps.shape == (B,)
    assert bsz == B
    assert bool(jnp.all(jnp.isfinite(model_pred)))
    assert bool(jnp.all(jnp.isfinite(target)))
    print("KERNEL_OK")
</pallas_src>

<mosaic_0001>
module attributes {stable_mosaic.version = 11 : i64} {
  func.func @_fused_kernel(%arg0: memref<2x4x256xf32, #tpu.memory_space<vmem>>, %arg1: memref<2x4x256xf32, #tpu.memory_space<vmem>>, %arg2: memref<2x4x1xf32, #tpu.memory_space<vmem>>, %arg3: memref<2x1x1xf32, #tpu.memory_space<vmem>>, %arg4: memref<2x1x1xf32, #tpu.memory_space<vmem>>, %arg5: memref<16x32xf32, #tpu.memory_space<vmem>>, %arg6: memref<2x32x1xf32, #tpu.memory_space<vmem>>, %arg7: memref<32x32xf32, #tpu.memory_space<vmem>>, %arg8: memref<1x32xf32, #tpu.memory_space<vmem>>, %arg9: memref<32x32xf32, #tpu.memory_space<vmem>>, %arg10: memref<1x32xf32, #tpu.memory_space<vmem>>, %arg11: memref<32x4xf32, #tpu.memory_space<vmem>>, %arg12: memref<32x1xf32, #tpu.memory_space<vmem>>, %arg13: memref<32x32xf32, #tpu.memory_space<vmem>>, %arg14: memref<32x32xf32, #tpu.memory_space<vmem>>, %arg15: memref<32x32xf32, #tpu.memory_space<vmem>>, %arg16: memref<32x32xf32, #tpu.memory_space<vmem>>, %arg17: memref<4x32xf32, #tpu.memory_space<vmem>>, %arg18: memref<4x1xf32, #tpu.memory_space<vmem>>, %arg19: memref<2x4x256xf32, #tpu.memory_space<vmem>>, %arg20: memref<2x4x256xf32, #tpu.memory_space<vmem>>) attributes {dimension_semantics = [], scalar_prefetch = 0 : i64, scratch_operands = 0 : i64, tpu.core_type = #tpu.core_type<tc>} {
    %c0 = arith.constant 0 : index
    %c0_0 = arith.constant 0 : index
    %c0_1 = arith.constant 0 : index
    %0 = vector.load %arg0[%c0, %c0_0, %c0_1] : memref<2x4x256xf32, #tpu.memory_space<vmem>>, vector<2x4x256xf32>
    %cst = arith.constant 1.821500e-01 : f32
    %1 = vector.broadcast %cst : f32 to vector<2x4x256xf32>
    %2 = arith.mulf %0, %1 : vector<2x4x256xf32>
    %c0_2 = arith.constant 0 : index
    %c0_3 = arith.constant 0 : index
    %c0_4 = arith.constant 0 : index
    %3 = vector.load %arg1[%c0_2, %c0_3, %c0_4] : memref<2x4x256xf32, #tpu.memory_space<vmem>>, vector<2x4x256xf32>
    %c0_5 = arith.constant 0 : index
    %c0_6 = arith.constant 0 : index
    %c0_7 = arith.constant 0 : index
    %4 = vector.load %arg2[%c0_5, %c0_6, %c0_7] : memref<2x4x1xf32, #tpu.memory_space<vmem>>, vector<2x4x1xf32>
    %cst_8 = arith.constant 1.000000e-01 : f32
    %5 = vector.broadcast %cst_8 : f32 to vector<2x4x1xf32>
    %6 = arith.mulf %5, %4 : vector<2x4x1xf32>
    %7 = vector.broadcast %6 : vector<2x4x1xf32> to vector<2x4x256xf32>
    %8 = arith.addf %3, %7 : vector<2x4x256xf32>
    %c0_9 = arith.constant 0 : index
    %c0_10 = arith.constant 0 : index
    %c0_11 = arith.constant 0 : index
    %9 = vector.load %arg3[%c0_9, %c0_10, %c0_11] : memref<2x1x1xf32, #tpu.memory_space<vmem>>, vector<2x1x1xf32>
    %10 = vector.broadcast %9 : vector<2x1x1xf32> to vector<2x4x256xf32>
    %11 = arith.mulf %10, %2 : vector<2x4x256xf32>
    %c0_12 = arith.constant 0 : index
    %c0_13 = arith.constant 0 : index
    %c0_14 = arith.constant 0 : index
    %12 = vector.load %arg4[%c0_12, %c0_13, %c0_14] : memref<2x1x1xf32, #tpu.memory_space<vmem>>, vector<2x1x1xf32>
    %13 = vector.broadcast %12 : vector<2x1x1xf32> to vector<2x4x256xf32>
    %14 = arith.mulf %13, %8 : vector<2x4x256xf32>
    %15 = arith.addf %11, %14 : vector<2x4x256xf32>
    %c0_15 = arith.constant 0 : index
    %c0_16 = arith.constant 0 : index
    %c0_17 = arith.constant 0 : index
    %16 = vector.load %arg20[%c0_15, %c0_16, %c0_17] : memref<2x4x256xf32, #tpu.memory_space<vmem>>, vector<2x4x256xf32>
    tpu.vector_store %arg20[%c0_15, %c0_16, %c0_17], %8 {strides = array<i32>} : memref<2x4x256xf32, #tpu.memory_space<vmem>>, vector<2x4x256xf32>,
    %c0_18 = arith.constant 0 : index
    %c0_19 = arith.constant 0 : index
    %17 = vector.load %arg5[%c0_18, %c0_19] : memref<16x32xf32, #tpu.memory_space<vmem>>, vector<16x32xf32>
    %cst_20 = arith.constant dense<0.000000e+00> : vector<16xf32>
    %18 = vector.multi_reduction <add>, %17, %cst_20 [1] : vector<16x32xf32> to vector<16xf32>
    %19 = vector.shape_cast %18 : vector<16xf32> to vector<16x1xf32>
    %cst_21 = arith.constant 3.200000e+01 : f32
    %20 = vector.broadcast %cst_21 : f32 to vector<16x1xf32>
    %21 = arith.divf %19, %20 : vector<16x1xf32>
    %22 = vector.broadcast %21 : vector<16x1xf32> to vector<16x32xf32>
    %23 = arith.subf %17, %22 : vector<16x32xf32>
    %24 = arith.mulf %23, %23 : vector<16x32xf32>
    %cst_22 = arith.constant dense<0.000000e+00> : vector<16xf32>
    %25 = vector.multi_reduction <add>, %24, %cst_22 [1] : vector<16x32xf32> to vector<16xf32>
    %26 = vector.shape_cast %25 : vector<16xf32> to vector<16x1xf32>
    %cst_23 = arith.constant 3.200000e+01 : f32
    %27 = vector.broadcast %cst_23 : f32 to vector<16x1xf32>
    %28 = arith.divf %26, %27 : vector<16x1xf32>
    %29 = vector.broadcast %21 : vector<16x1xf32> to vector<16x32xf32>
    %30 = arith.subf %17, %29 : vector<16x32xf32>
    %cst_24 = arith.constant 9.99999974E-6 : f32
    %31 = vector.broadcast %cst_24 : f32 to vector<16x1xf32>
    %32 = arith.addf %28, %31 : vector<16x1xf32>
    %33 = math.rsqrt %32 : vector<16x1xf32>
    %34 = vector.broadcast %33 : vector<16x1xf32> to vector<16x32xf32>
    %35 = arith.mulf %30, %34 : vector<16x32xf32>
    %c0_25 = arith.constant 0 : index
    %c0_26 = arith.constant 0 : index
    %36 = vector.load %arg7[%c0_25, %c0_26] : memref<32x32xf32, #tpu.memory_space<vmem>>, vector<32x32xf32>
    %cst_27 = arith.constant dense<0.000000e+00> : vector<16x32xf32>
    %37 = tpu.matmul %35, %36, %cst_27 {dimension_numbers = #tpu.dot_dimension_numbers<[1], [0], [0], [1], [0, 0, 1, 1], [], []>} : vector<16x32xf32>, vector<32x32xf32>, vector<16x32xf32> -> vector<16x32xf32>
    %c0_28 = arith.constant 0 : index
    %c0_29 = arith.constant 0 : index
    %38 = vector.load %arg8[%c0_28, %c0_29] : memref<1x32xf32, #tpu.memory_space<vmem>>, vector<1x32xf32>
    %39 = vector.broadcast %38 : vector<1x32xf32> to vector<16x32xf32>
    %40 = arith.addf %37, %39 : vector<16x32xf32>
    %41 = arith.mulf %40, %40 : vector<16x32xf32>
    %42 = arith.mulf %40, %41 : vector<16x32xf32>
    %cst_30 = arith.constant 4.471500e-02 : f32
    %43 = vector.broadcast %cst_30 : f32 to vector<16x32xf32>
    %44 = arith.mulf %43, %42 : vector<16x32xf32>
    %45 = arith.addf %40, %44 : vector<16x32xf32>
    %cst_31 = arith.constant 0.797884583 : f32
    %46 = vector.broadcast %cst_31 : f32 to vector<16x32xf32>
    %47 = arith.mulf %46, %45 : vector<16x32xf32>
    %48 = math.tanh %47 : vector<16x32xf32>
    %cst_32 = arith.constant 1.000000e+00 : f32
    %49 = vector.broadcast %cst_32 : f32 to vector<16x32xf32>
    %50 = arith.addf %49, %48 : vector<16x32xf32>
    %cst_33 = arith.constant 5.000000e-01 : f32
    %51 = vector.broadcast %cst_33 : f32 to vector<16x32xf32>
    %52 = arith.mulf %51, %50 : vector<16x32xf32>
    %53 = arith.mulf %40, %52 : vector<16x32xf32>
    %c0_34 = arith.constant 0 : index
    %c0_35 = arith.constant 0 : index
    %54 = vector.load %arg9[%c0_34, %c0_35] : memref<32x32xf32, #tpu.memory_space<vmem>>, vector<32x32xf32>
    %cst_36 = arith.constant dense<0.000000e+00> : vector<16x32xf32>
    %55 = tpu.matmul %53, %54, %cst_36 {dimension_numbers = #tpu.dot_dimension_numbers<[1], [0], [0], [1], [0, 0, 1, 1], [], []>} : vector<16x32xf32>, vector<32x32xf32>, vector<16x32xf32> -> vector<16x32xf32>
    %c0_37 = arith.constant 0 : index
    %c0_38 = arith.constant 0 : index
    %56 = vector.load %arg10[%c0_37, %c0_38] : memref<1x32xf32, #tpu.memory_space<vmem>>, vector<1x32xf32>
    %57 = vector.broadcast %56 : vector<1x32xf32> to vector<16x32xf32>
    %58 = arith.addf %55, %57 : vector<16x32xf32>
    %59 = vector.extract_strided_slice %15 {offsets = [0, 0, 0], sizes = [1, 4, 256], strides = [1, 1, 1]} : vector<2x4x256xf32> to vector<1x4x256xf32>
    %60 = vector.shape_cast %59 : vector<1x4x256xf32> to vector<4x256xf32>
    %c0_39 = arith.constant 0 : index
    %c0_40 = arith.constant 0 : index
    %61 = vector.load %arg11[%c0_39, %c0_40] : memref<32x4xf32, #tpu.memory_space<vmem>>, vector<32x4xf32>
    %cst_41 = arith.constant dense<0.000000e+00> : vector<32x256xf32>
    %62 = tpu.matmul %61, %60, %cst_41 {dimension_numbers = #tpu.dot_dimension_numbers<[1], [0], [0], [1], [0, 0, 1, 1], [], []>} : vector<32x4xf32>, vector<4x256xf32>, vector<32x256xf32> -> vector<32x256xf32>
    %c0_42 = arith.constant 0 : index
    %c0_43 = arith.constant 0 : index
    %63 = vector.load %arg12[%c0_42, %c0_43] : memref<32x1xf32, #tpu.memory_space<vmem>>, vector<32x1xf32>
    %64 = vector.broadcast %63 : vector<32x1xf32> to vector<32x256xf32>
    %65 = arith.addf %62, %64 : vector<32x256xf32>
    %c0_44 = arith.constant 0 : index
    %c0_45 = arith.constant 0 : index
    %c0_46 = arith.constant 0 : index
    %66 = vector.load %arg6[%c0_44, %c0_45, %c0_46] : memref<2x32x1xf32, #tpu.memory_space<vmem>>, vector<1x32x1xf32>
    %67 = vector.shape_cast %66 : vector<1x32x1xf32> to vector<32x1xf32>
    %68 = vector.broadcast %67 : vector<32x1xf32> to vector<32x256xf32>
    %69 = arith.addf %65, %68 : vector<32x256xf32>
    %70 = arith.negf %69 : vector<32x256xf32>
    %71 = math.exp %70 : vector<32x256xf32>
    %cst_47 = arith.constant 1.000000e+00 : f32
    %72 = vector.broadcast %cst_47 : f32 to vector<32x256xf32>
    %73 = arith.addf %72, %71 : vector<32x256xf32>
    %74 = arith.divf %72, %73 : vector<32x256xf32>
    %75 = arith.mulf %69, %74 : vector<32x256xf32>
    %c0_48 = arith.constant 0 : index
    %c0_49 = arith.constant 0 : index
    %76 = vector.load %arg13[%c0_48, %c0_49] : memref<32x32xf32, #tpu.memory_space<vmem>>, vector<32x32xf32>
    %cst_50 = arith.constant dense<0.000000e+00> : vector<32x256xf32>
    %77 = tpu.matmul %76, %75, %cst_50 {dimension_numbers = #tpu.dot_dimension_numbers<[1], [0], [0], [1], [0, 0, 1, 1], [], []>} : vector<32x32xf32>, vector<32x256xf32>, vector<32x256xf32> -> vector<32x256xf32>
    %78 = vector.extract_strided_slice %58 {offsets = [0, 0], sizes = [8, 32], strides = [1, 1]} : vector<16x32xf32> to vector<8x32xf32>
    %c0_51 = arith.constant 0 : index
    %c0_52 = arith.constant 0 : index
    %79 = vector.load %arg14[%c0_51, %c0_52] : memref<32x32xf32, #tpu.memory_space<vmem>>, vector<32x32xf32>
    %cst_53 = arith.constant dense<0.000000e+00> : vector<8x32xf32>
    %80 = tpu.matmul %78, %79, %cst_53 {dimension_numbers = #tpu.dot_dimension_numbers<[1], [0], [0], [1], [0, 0, 1, 1], [], []>} : vector<8x32xf32>, vector<32x32xf32>, vector<8x32xf32> -> vector<8x32xf32>
    %c0_54 = arith.constant 0 : index
    %c0_55 = arith.constant 0 : index
    %81 = vector.load %arg15[%c0_54, %c0_55] : memref<32x32xf32, #tpu.memory_space<vmem>>, vector<32x32xf32>
    %cst_56 = arith.constant dense<0.000000e+00> : vector<8x32xf32>
    %82 = tpu.matmul %78, %81, %cst_56 {dimension_numbers = #tpu.dot_dimension_numbers<[1], [0], [0], [1], [0, 0, 1, 1], [], []>} : vector<8x32xf32>, vector<32x32xf32>, vector<8x32xf32> -> vector<8x32xf32>
    %cst_57 = arith.constant dense<0.000000e+00> : vector<8x256xf32>
    %83 = tpu.matmul %80, %77, %cst_57 {dimension_numbers = #tpu.dot_dimension_numbers<[1], [0], [0], [1], [0, 0, 1, 1], [], []>} : vector<8x32xf32>, vector<32x256xf32>, vector<8x256xf32> -> vector<8x256xf32>
    %cst_58 = arith.constant 0.176776692 : f32
    %84 = vector.broadcast %cst_58 : f32 to vector<8x256xf32>
    %85 = arith.mulf %83, %84 : vector<8x256xf32>
    %cst_59 = arith.constant dense<0xFF800000> : vector<256xf32>
    %86 = vector.multi_reduction <maximumf>, %85, %cst_59 [0] : vector<8x256xf32> to vector<256xf32>
    %87 = vector.shape_cast %86 : vector<256xf32> to vector<1x256xf32>
    %88 = vector.broadcast %87 : vector<1x256xf32> to vector<8x256xf32>
    %89 = arith.subf %85, %88 : vector<8x256xf32>
    %90 = math.exp %89 : vector<8x256xf32>
    %cst_60 = arith.constant dense<0.000000e+00> : vector<256xf32>
    %91 = vector.multi_reduction <add>, %90, %cst_60 [0] : vector<8x256xf32> to vector<256xf32>
    %92 = vector.shape_cast %91 : vector<256xf32> to vector<1x256xf32>
    %93 = tpu.reciprocal %92 {approx = true} : vector<1x256xf32> -> vector<1x256xf32>
    %94 = vector.broadcast %93 : vector<1x256xf32> to vector<8x256xf32>
    %95 = arith.mulf %90, %94 : vector<8x256xf32>
    %cst_61 = arith.constant dense<0.000000e+00> : vector<32x256xf32>
    %96 = tpu.matmul %82, %95, %cst_61 {dimension_numbers = #tpu.dot_dimension_numbers<[0], [0], [1], [1], [0, 1, 1, 1], [], []>} : vector<8x32xf32>, vector<8x256xf32>, vector<32x256xf32> -> vector<32x256xf32>
    %c0_62 = arith.constant 0 : index
    %c0_63 = arith.constant 0 : index
    %97 = vector.load %arg16[%c0_62, %c0_63] : memref<32x32xf32, #tpu.memory_space<vmem>>, vector<32x32xf32>
    %cst_64 = arith.constant dense<0.000000e+00> : vector<32x256xf32>
    %98 = tpu.matmul %97, %96, %cst_64 {dimension_numbers = #tpu.dot_dimension_numbers<[1], [0], [0], [1], [0, 0, 1, 1], [], []>} : vector<32x32xf32>, vector<32x256xf32>, vector<32x256xf32> -> vector<32x256xf32>
    %99 = arith.addf %75, %98 : vector<32x256xf32>
    %c0_65 = arith.constant 0 : index
    %c0_66 = arith.constant 0 : index
    %100 = vector.load %arg17[%c0_65, %c0_66] : memref<4x32xf32, #tpu.memory_space<vmem>>, vector<4x32xf32>
    %cst_67 = arith.constant dense<0.000000e+00> : vector<4x256xf32>
    %101 = tpu.matmul %100, %99, %cst_67 {dimension_numbers = #tpu.dot_dimension_numbers<[1], [0], [0], [1], [0, 0, 1, 1], [], []>} : vector<4x32xf32>, vector<32x256xf32>, vector<4x256xf32> -> vector<4x256xf32>
    %c0_68 = arith.constant 0 : index
    %c0_69 = arith.constant 0 : index
    %102 = vector.load %arg18[%c0_68, %c0_69] : memref<4x1xf32, #tpu.memory_space<vmem>>, vector<4x1xf32>
    %103 = vector.broadcast %102 : vector<4x1xf32> to vector<4x256xf32>
    %104 = arith.addf %101, %103 : vector<4x256xf32>
    %c0_70 = arith.constant 0 : index
    %c0_71 = arith.constant 0 : index
    %c0_72 = arith.constant 0 : index
    %105 = vector.load %arg19[%c0_70, %c0_71, %c0_72] : memref<2x4x256xf32, #tpu.memory_space<vmem>>, vector<1x4x256xf32>
    %106 = vector.shape_cast %105 : vector<1x4x256xf32> to vector<4x256xf32>
    %107 = vector.shape_cast %104 : vector<4x256xf32> to vector<1x4x256xf32>
    tpu.vector_store %arg19[%c0_70, %c0_71, %c0_72], %107 {strides = array<i32>} : memref<2x4x256xf32, #tpu.memory_space<vmem>>, vector<1x4x256xf32>,
    %108 = vector.extract_strided_slice %15 {offsets = [1, 0, 0], sizes = [1, 4, 256], strides = [1, 1, 1]} : vector<2x4x256xf32> to vector<1x4x256xf32>
    %109 = vector.shape_cast %108 : vector<1x4x256xf32> to vector<4x256xf32>
    %c0_73 = arith.constant 0 : index
    %c0_74 = arith.constant 0 : index
    %110 = vector.load %arg11[%c0_73, %c0_74] : memref<32x4xf32, #tpu.memory_space<vmem>>, vector<32x4xf32>
    %cst_75 = arith.constant dense<0.000000e+00> : vector<32x256xf32>
    %111 = tpu.matmul %110, %109, %cst_75 {dimension_numbers = #tpu.dot_dimension_numbers<[1], [0], [0], [1], [0, 0, 1, 1], [], []>} : vector<32x4xf32>, vector<4x256xf32>, vector<32x256xf32> -> vector<32x256xf32>
    %c0_76 = arith.constant 0 : index
    %c0_77 = arith.constant 0 : index
    %112 = vector.load %arg12[%c0_76, %c0_77] : memref<32x1xf32, #tpu.memory_space<vmem>>, vector<32x1xf32>
    %113 = vector.broadcast %112 : vector<32x1xf32> to vector<32x256xf32>
    %114 = arith.addf %111, %113 : vector<32x256xf32>
    %c1 = arith.constant 1 : index
    %c0_78 = arith.constant 0 : index
    %c0_79 = arith.constant 0 : index
    %115 = vector.load %arg6[%c1, %c0_78, %c0_79] : memref<2x32x1xf32, #tpu.memory_space<vmem>>, vector<1x32x1xf32>
    %116 = vector.shape_cast %115 : vector<1x32x1xf32> to vector<32x1xf32>
    %117 = vector.broadcast %116 : vector<32x1xf32> to vector<32x256xf32>
    %118 = arith.addf %114, %117 : vector<32x256xf32>
    %119 = arith.negf %118 : vector<32x256xf32>
    %120 = math.exp %119 : vector<32x256xf32>
    %cst_80 = arith.constant 1.000000e+00 : f32
    %121 = vector.broadcast %cst_80 : f32 to vector<32x256xf32>
    %122 = arith.addf %121, %120 : vector<32x256xf32>
    %123 = arith.divf %121, %122 : vector<32x256xf32>
    %124 = arith.mulf %118, %123 : vector<32x256xf32>
    %c0_81 = arith.constant 0 : index
    %c0_82 = arith.constant 0 : index
    %125 = vector.load %arg13[%c0_81, %c0_82] : memref<32x32xf32, #tpu.memory_space<vmem>>, vector<32x32xf32>
    %cst_83 = arith.constant dense<0.000000e+00> : vector<32x256xf32>
    %126 = tpu.matmul %125, %124, %cst_83 {dimension_numbers = #tpu.dot_dimension_numbers<[1], [0], [0], [1], [0, 0, 1, 1], [], []>} : vector<32x32xf32>, vector<32x256xf32>, vector<32x256xf32> -> vector<32x256xf32>
    %127 = vector.extract_strided_slice %58 {offsets = [8, 0], sizes = [8, 32], strides = [1, 1]} : vector<16x32xf32> to vector<8x32xf32>
    %c0_84 = arith.constant 0 : index
    %c0_85 = arith.constant 0 : index
    %128 = vector.load %arg14[%c0_84, %c0_85] : memref<32x32xf32, #tpu.memory_space<vmem>>, vector<32x32xf32>
    %cst_86 = arith.constant dense<0.000000e+00> : vector<8x32xf32>
    %129 = tpu.matmul %127, %128, %cst_86 {dimension_numbers = #tpu.dot_dimension_numbers<[1], [0], [0], [1], [0, 0, 1, 1], [], []>} : vector<8x32xf32>, vector<32x32xf32>, vector<8x32xf32> -> vector<8x32xf32>
    %c0_87 = arith.constant 0 : index
    %c0_88 = arith.constant 0 : index
    %130 = vector.load %arg15[%c0_87, %c0_88] : memref<32x32xf32, #tpu.memory_space<vmem>>, vector<32x32xf32>
    %cst_89 = arith.constant dense<0.000000e+00> : vector<8x32xf32>
    %131 = tpu.matmul %127, %130, %cst_89 {dimension_numbers = #tpu.dot_dimension_numbers<[1], [0], [0], [1], [0, 0, 1, 1], [], []>} : vector<8x32xf32>, vector<32x32xf32>, vector<8x32xf32> -> vector<8x32xf32>
    %cst_90 = arith.constant dense<0.000000e+00> : vector<8x256xf32>
    %132 = tpu.matmul %129, %126, %cst_90 {dimension_numbers = #tpu.dot_dimension_numbers<[1], [0], [0], [1], [0, 0, 1, 1], [], []>} : vector<8x32xf32>, vector<32x256xf32>, vector<8x256xf32> -> vector<8x256xf32>
    %cst_91 = arith.constant 0.176776692 : f32
    %133 = vector.broadcast %cst_91 : f32 to vector<8x256xf32>
    %134 = arith.mulf %132, %133 : vector<8x256xf32>
    %cst_92 = arith.constant dense<0xFF800000> : vector<256xf32>
    %135 = vector.multi_reduction <maximumf>, %134, %cst_92 [0] : vector<8x256xf32> to vector<256xf32>
    %136 = vector.shape_cast %135 : vector<256xf32> to vector<1x256xf32>
    %137 = vector.broadcast %136 : vector<1x256xf32> to vector<8x256xf32>
    %138 = arith.subf %134, %137 : vector<8x256xf32>
    %139 = math.exp %138 : vector<8x256xf32>
    %cst_93 = arith.constant dense<0.000000e+00> : vector<256xf32>
    %140 = vector.multi_reduction <add>, %139, %cst_93 [0] : vector<8x256xf32> to vector<256xf32>
    %141 = vector.shape_cast %140 : vector<256xf32> to vector<1x256xf32>
    %142 = tpu.reciprocal %141 {approx = true} : vector<1x256xf32> -> vector<1x256xf32>
    %143 = vector.broadcast %142 : vector<1x256xf32> to vector<8x256xf32>
    %144 = arith.mulf %139, %143 : vector<8x256xf32>
    %cst_94 = arith.constant dense<0.000000e+00> : vector<32x256xf32>
    %145 = tpu.matmul %131, %144, %cst_94 {dimension_numbers = #tpu.dot_dimension_numbers<[0], [0], [1], [1], [0, 1, 1, 1], [], []>} : vector<8x32xf32>, vector<8x256xf32>, vector<32x256xf32> -> vector<32x256xf32>
    %c0_95 = arith.constant 0 : index
    %c0_96 = arith.constant 0 : index
    %146 = vector.load %arg16[%c0_95, %c0_96] : memref<32x32xf32, #tpu.memory_space<vmem>>, vector<32x32xf32>
    %cst_97 = arith.constant dense<0.000000e+00> : vector<32x256xf32>
    %147 = tpu.matmul %146, %145, %cst_97 {dimension_numbers = #tpu.dot_dimension_numbers<[1], [0], [0], [1], [0, 0, 1, 1], [], []>} : vector<32x32xf32>, vector<32x256xf32>, vector<32x256xf32> -> vector<32x256xf32>
    %148 = arith.addf %124, %147 : vector<32x256xf32>
    %c0_98 = arith.constant 0 : index
    %c0_99 = arith.constant 0 : index
    %149 = vector.load %arg17[%c0_98, %c0_99] : memref<4x32xf32, #tpu.memory_space<vmem>>, vector<4x32xf32>
    %cst_100 = arith.constant dense<0.000000e+00> : vector<4x256xf32>
    %150 = tpu.matmul %149, %148, %cst_100 {dimension_numbers = #tpu.dot_dimension_numbers<[1], [0], [0], [1], [0, 0, 1, 1], [], []>} : vector<4x32xf32>, vector<32x256xf32>, vector<4x256xf32> -> vector<4x256xf32>
    %c0_101 = arith.constant 0 : index
    %c0_102 = arith.constant 0 : index
    %151 = vector.load %arg18[%c0_101, %c0_102] : memref<4x1xf32, #tpu.memory_space<vmem>>, vector<4x1xf32>
    %152 = vector.broadcast %151 : vector<4x1xf32> to vector<4x256xf32>
    %153 = arith.addf %150, %152 : vector<4x256xf32>
    %c1_103 = arith.constant 1 : index
    %c0_104 = arith.constant 0 : index
    %c0_105 = arith.constant 0 : index
    %154 = vector.load %arg19[%c1_103, %c0_104, %c0_105] : memref<2x4x256xf32, #tpu.memory_space<vmem>>, vector<1x4x256xf32>
    %155 = vector.shape_cast %154 : vector<1x4x256xf32> to vector<4x256xf32>
    %156 = vector.shape_cast %153 : vector<4x256xf32> to vector<1x4x256xf32>
    tpu.vector_store %arg19[%c1_103, %c0_104, %c0_105], %156 {strides = array<i32>} : memref<2x4x256xf32, #tpu.memory_space<vmem>>, vector<1x4x256xf32>,
    return
  }
}

</mosaic_0001>

<llo_original>
// kernel: forward.3
$region0: #{forward.3}
  #allocation0 [shape = 'u32[]', space=smem, size = 0x4, offset = 0x4, fixed_abs, tag = 'smem constant byte address 0x4 - core index']
  #allocation1 [shape = 'u32[144,128]{1,0:T(1,128)}', space=vmem, size = 0x12000, scoped, tag = 'internal scratch']
  %s0 = inlined_call_operand.vmem [shape: f32[2,4,256], index: 0, kind: input, shape index: {}]
  %s1 = inlined_call_operand.vmem [shape: f32[2,4,256], index: 1, kind: input, shape index: {}]
  %s2 = inlined_call_operand.vmem [shape: f32[2,4,1], index: 2, kind: input, shape index: {}]
  %s3 = inlined_call_operand.vmem [shape: f32[2,1,1], index: 3, kind: input, shape index: {}]
  %s4 = inlined_call_operand.vmem [shape: f32[2,1,1], index: 4, kind: input, shape index: {}]
  %s5 = inlined_call_operand.vmem [shape: f32[16,32], index: 5, kind: input, shape index: {}]
  %s6 = inlined_call_operand.vmem [shape: f32[2,32,1], index: 6, kind: input, shape index: {}]
  %s7 = inlined_call_operand.vmem [shape: f32[32,32], index: 7, kind: input, shape index: {}]
  %s8 = inlined_call_operand.vmem [shape: f32[1,32], index: 8, kind: input, shape index: {}]
  %s9 = inlined_call_operand.vmem [shape: f32[32,32], index: 9, kind: input, shape index: {}]
  %s10 = inlined_call_operand.vmem [shape: f32[1,32], index: 10, kind: input, shape index: {}]
  %s11 = inlined_call_operand.vmem [shape: f32[32,4], index: 11, kind: input, shape index: {}]
  %s12 = inlined_call_operand.vmem [shape: f32[32,1], index: 12, kind: input, shape index: {}]
  %s13 = inlined_call_operand.vmem [shape: f32[32,32], index: 13, kind: input, shape index: {}]
  %s14 = inlined_call_operand.vmem [shape: f32[32,32], index: 14, kind: input, shape index: {}]
  %s15 = inlined_call_operand.vmem [shape: f32[32,32], index: 15, kind: input, shape index: {}]
  %s16 = inlined_call_operand.vmem [shape: f32[32,32], index: 16, kind: input, shape index: {}]
  %s17 = inlined_call_operand.vmem [shape: f32[4,32], index: 17, kind: input, shape index: {}]
  %s18 = inlined_call_operand.vmem [shape: f32[4,1], index: 18, kind: input, shape index: {}]
  %s19 = inlined_call_operand.vmem [shape: f32[2,4,256], index: 19, kind: output, shape index: {0}]
  %s20 = inlined_call_operand.vmem [shape: f32[2,4,256], index: 20, kind: output, shape index: {1}]
  %21 = xla_tuple %s19, %s20
  %s22 = sld [smem:[#allocation0]]
  $region94: #{forward.3} parent=0
    _
  %s24 = ssub.s32 1, %s22
  %s25 = scalar_select 0, %s24, %s22
  // Predicated region
  $region2: #{forward.3} parent=0 // pred_check
    _
  $region3: #{forward.3} parent=0 // pred_check_branch
    %27 = sbr.rel (0) target = $region5
  $region4: #{forward.3} parent=0 // pred_region
    _
  $region5: #{forward.3} parent=0 // pred_fallthru
    _
  // Predicated region
  $region6: #{forward.3} parent=0 // pred_check
    _
  $region7: #{forward.3} parent=0 // pred_check_branch
    %29 = sbr.rel (0) target = $region9
  $region8: #{forward.3} parent=0 // pred_region
    _
  $region9: #{forward.3} parent=0 // pred_fallthru
    _
  // Predicated region
  $region10: #{forward.3} parent=0 // pred_check
    _
  $region11: #{forward.3} parent=0 // pred_check_branch
    %31 = sbr.rel (0) target = $region13
  $region12: #{forward.3} parent=0 // pred_region
    _
  $region13: #{forward.3} parent=0 // pred_fallthru
    _
  // Predicated region
  $region14: #{forward.3} parent=0 // pred_check
    _
  $region15: #{forward.3} parent=0 // pred_check_branch
    %33 = sbr.rel (0) target = $region17
  $region16: #{forward.3} parent=0 // pred_region
    _
  $region17: #{forward.3} parent=0 // pred_fallthru
    _
  // Predicated region
  $region18: #{forward.3} parent=0 // pred_check
    _
  $region19: #{forward.3} parent=0 // pred_check_branch
    %35 = sbr.rel (0) target = $region21
  $region20: #{forward.3} parent=0 // pred_region
    _
  $region21: #{forward.3} parent=0 // pred_fallthru
    _
  // Predicated region
  $region22: #{forward.3} parent=0 // pred_check
    _
  $region23: #{forward.3} parent=0 // pred_check_branch
    %37 = sbr.rel (0) target = $region25
  $region24: #{forward.3} parent=0 // pred_region
    _
  $region25: #{forward.3} parent=0 // pred_fallthru
    _
  // Predicated region
  $region26: #{forward.3} parent=0 // pred_check
    _
  $region27: #{forward.3} parent=0 // pred_check_branch
    %39 = sbr.rel (0) target = $region29
  $region28: #{forward.3} parent=0 // pred_region
    _
  $region29: #{forward.3} parent=0 // pred_fallthru
    _
  // Predicated region
  $region30: #{forward.3} parent=0 // pred_check
    _
  $region31: #{forward.3} parent=0 // pred_check_branch
    %41 = sbr.rel (0) target = $region33
  $region32: #{forward.3} parent=0 // pred_region
    _
  $region33: #{forward.3} parent=0 // pred_fallthru
    _
  // Predicated region
  $region34: #{forward.3} parent=0 // pred_check
    _
  $region35: #{forward.3} parent=0 // pred_check_branch
    %43 = sbr.rel (0) target = $region37
  $region36: #{forward.3} parent=0 // pred_region
    _
  $region37: #{forward.3} parent=0 // pred_fallthru
    _
  // Predicated region
  $region38: #{forward.3} parent=0 // pred_check
    _
  $region39: #{forward.3} parent=0 // pred_check_branch
    %45 = sbr.rel (0) target = $region41
  $region40: #{forward.3} parent=0 // pred_region
    _
  $region41: #{forward.3} parent=0 // pred_fallthru
    _
  // Predicated region
  $region42: #{forward.3} parent=0 // pred_check
    _
  $region43: #{forward.3} parent=0 // pred_check_branch
    %47 = sbr.rel (0) target = $region45
  $region44: #{forward.3} parent=0 // pred_region
    _
  $region45: #{forward.3} parent=0 // pred_fallthru
    _
  // Predicated region
  $region46: #{forward.3} parent=0 // pred_check
    _
  $region47: #{forward.3} parent=0 // pred_check_branch
    %49 = sbr.rel (0) target = $region49
  $region48: #{forward.3} parent=0 // pred_region
    _
  $region49: #{forward.3} parent=0 // pred_fallthru
    _
  // Predicated region
  $region50: #{forward.3} parent=0 // pred_check
    _
  $region51: #{forward.3} parent=0 // pred_check_branch
    %51 = sbr.rel (0) target = $region53
  $region52: #{forward.3} parent=0 // pred_region
    _
  $region53: #{forward.3} parent=0 // pred_fallthru
    _
  // Predicated region
  $region54: #{forward.3} parent=0 // pred_check
    _
  $region55: #{forward.3} parent=0 // pred_check_branch
    %53 = sbr.rel (0) target = $region57
  $region56: #{forward.3} parent=0 // pred_region
    _
  $region57: #{forward.3} parent=0 // pred_fallthru
    _
  // Predicated region
  $region58: #{forward.3} parent=0 // pred_check
    _
  $region59: #{forward.3} parent=0 // pred_check_branch
    %55 = sbr.rel (0) target = $region61
  $region60: #{forward.3} parent=0 // pred_region
    _
  $region61: #{forward.3} parent=0 // pred_fallthru
    _
  // Predicated region
  $region62: #{forward.3} parent=0 // pred_check
    _
  $region63: #{forward.3} parent=0 // pred_check_branch
    %57 = sbr.rel (0) target = $region65
  $region64: #{forward.3} parent=0 // pred_region
    _
  $region65: #{forward.3} parent=0 // pred_fallthru
    _
  // Predicated region
  $region66: #{forward.3} parent=0 // pred_check
    _
  $region67: #{forward.3} parent=0 // pred_check_branch
    %59 = sbr.rel (0) target = $region69
  $region68: #{forward.3} parent=0 // pred_region
    _
  $region69: #{forward.3} parent=0 // pred_fallthru
    _
  // Predicated region
  $region70: #{forward.3} parent=0 // pred_check
    _
  $region71: #{forward.3} parent=0 // pred_check_branch
    %61 = sbr.rel (0) target = $region73
  $region72: #{forward.3} parent=0 // pred_region
    _
  $region73: #{forward.3} parent=0 // pred_fallthru
    _
  // Predicated region
  $region74: #{forward.3} parent=0 // pred_check
    _
  $region75: #{forward.3} parent=0 // pred_check_branch
    %63 = sbr.rel (0) target = $region77
  $region76: #{forward.3} parent=0 // pred_region
    _
  $region77: #{forward.3} parent=0 // pred_fallthru
    _
  %v64 = vld [vmem:[%s0] sm:$0xff]
  %v65 = vld [vmem:[%s0 + $0x8] sm:$0xff]
  %v66 = vmul.f32 %v64, 0.18215
  %v67 = vmul.f32 %v65, 0.18215
  %v68 = vld [vmem:[%s1] sm:$0xff]
  %v69 = vld [vmem:[%s1 + $0x8] sm:$0xff]
  %v70 = vld [vmem:[%s2] sm:$0xf]
  %v71 = vld [vmem:[%s2 + $0x4] sm:$0xf]
  %v72 = vmul.f32 %v70, 0.1
  %v73 = vmul.f32 %v71, 0.1
  %75 = vset.pattern.permute.xlu0 0
  %76 = vperm.xlu0 %75, %v72
  %v77 = vpop.permute.xlu0 %76
  %79 = vset.pattern.permute.xlu0 0
  %80 = vperm.xlu0 %79, %v73
  %v81 = vpop.permute.xlu0 %80
  %v83 = vunpack.c.l.s4 839922192
  %v84 = vunpack.c.0.s8 %v83
  %v85 = vlaneseq
  %v86 = vshrl.u32 %v85, 7
  %v87 = vsub.s32 %v84, %v86
  %v88 = vrot.slane %v77, %v87
  %v90 = vunpack.c.l.s4 839922192
  %v91 = vunpack.c.0.s8 %v90
  %v92 = vlaneseq
  %v93 = vshrl.u32 %v92, 7
  %v94 = vsub.s32 %v91, %v93
  %v95 = vrot.slane %v81, %v94
  %v98 = vadd.f32 %v68, %v88
  %v99 = vadd.f32 %v69, %v95
  %v100 = vld [vmem:[%s3] sm:$0x1]
  %v101 = vld [vmem:[%s3 + $0x1] sm:$0x1]
  %v104 = vlaneseq
  %v105 = vshrl.u32 %v104, 7
  %v106 = vsub.s32 0, %v105
  %v107 = vrot.slane %v100, %v106
  %v108 = vlaneseq
  %v109 = vshrl.u32 %v108, 7
  %v110 = vsub.s32 0, %v109
  %v111 = vrot.slane %v101, %v110
  %112 = vset.pattern.permute.xlu0 0
  %113 = vperm.xlu0 %112, %v107
  %v114 = vpop.permute.xlu0 %113
  %116 = vset.pattern.permute.xlu0 0
  %117 = vperm.xlu0 %116, %v111
  %v118 = vpop.permute.xlu0 %117
  %v120 = vmul.f32 %v114, %v66
  %v121 = vmul.f32 %v118, %v67
  %v122 = vld [vmem:[%s4] sm:$0x1]
  %v123 = vld [vmem:[%s4 + $0x1] sm:$0x1]
  %v126 = vlaneseq
  %v127 = vshrl.u32 %v126, 7
  %v128 = vsub.s32 0, %v127
  %v129 = vrot.slane %v122, %v128
  %v130 = vlaneseq
  %v131 = vshrl.u32 %v130, 7
  %v132 = vsub.s32 0, %v131
  %v133 = vrot.slane %v123, %v132
  %134 = vset.pattern.permute.xlu0 0
  %135 = vperm.xlu0 %134, %v129
  %v136 = vpop.permute.xlu0 %135
  %138 = vset.pattern.permute.xlu0 0
  %139 = vperm.xlu0 %138, %v133
  %v140 = vpop.permute.xlu0 %139
  %v142 = vmul.f32 %v136, %v98
  %v143 = vmul.f32 %v140, %v99
  %v144 = vadd.f32 %v120, %v142
  %v145 = vadd.f32 %v121, %v143
  %146 = vst [vmem:[%s20] sm:$0xff] %v98
  %147 = vst [vmem:[%s20 + $0x8] sm:$0xff] %v99
  %v148 = vld [vmem:[%s5] sm:$0xff]
  %v149 = vld [vmem:[%s5 + $0x8] sm:$0xff]
  %vm150 = vcmask 261120
  %v151 = vsel %vm150, %v148, 0.0
  %152 = vadd.xlane.f32.xlu0 %v151
  %v153 = vpop.xlane.xlu0 %152
  %v154 = vsel %vm150, %v149, 0.0
  %155 = vadd.xlane.f32.xlu0 %v154
  %v156 = vpop.xlane.xlu0 %155
  %v157 = vrcp.pop 32.0
  %v158 = vmul.f32 %v153, %v157
  %v159 = vmul.f32 %v156, %v157
  %v160 = vsub.f32 %v148, %v158
  %v161 = vsub.f32 %v149, %v159
  %v162 = vmul.f32 %v160, %v160
  %v163 = vmul.f32 %v161, %v161
  %v164 = vsel %vm150, %v162, 0.0
  %165 = vadd.xlane.f32.xlu0 %v164
  %v166 = vpop.xlane.xlu0 %165
  %v167 = vsel %vm150, %v163, 0.0
  %168 = vadd.xlane.f32.xlu0 %v167
  %v169 = vpop.xlane.xlu0 %168
  %v170 = vmul.f32 %v166, %v157
  %v171 = vmul.f32 %v169, %v157
  %v172 = vadd.f32 %v170, 1e-05
  %v173 = vadd.f32 %v171, 1e-05
  %v174 = vrsqrt.pop %v172
  %v175 = vrsqrt.pop %v173
  %v176 = vmul.f32 %v160, %v174
  %v177 = vmul.f32 %v161, %v175
  %v178 = vld [vmem:[%s7] sm:$0xff]
  %v179 = vld [vmem:[%s7 + $0x8] sm:$0xff]
  %v180 = vld [vmem:[%s7 + $0x10] sm:$0xff]
  %v181 = vld [vmem:[%s7 + $0x18] sm:$0xff]
  %v182 = vld [vmem:[%s8] sm:$0x1]
  %v184 = vlaneseq
  %v185 = vshrl.u32 %v184, 7
  %v186 = vsub.s32 0, %v185
  %v187 = vrot.slane %v182, %v186
  %v190 = vsel %vm150, %v176, 0
  %v193 = vsel %vm150, %v177, 0
  %195 = vmatprep.subr.mxu0 0.0
  %196 = vmatpush1.msra.mxu0 0.0
  %197 = vmatprep.subr.mxu0 0.0
  %198 = vmatpush1.msra.mxu0 0.0
  %199 = vmatprep.subr.mxu0 0.0
  %200 = vmatpush1.msra.mxu0 0.0
  %201 = vmatprep.subr.mxu0 0.0
  %202 = vmatpush1.msra.mxu0 0.0
  %203 = vmatprep.subr.mxu0 0.0
  %204 = vmatpush1.msra.mxu0 0.0
  %205 = vmatprep.subr.mxu0 0.0
  %206 = vmatpush1.msra.mxu0 0.0
  %207 = vmatprep.subr.mxu0 0.0
  %208 = vmatpush1.msra.mxu0 0.0
  %209 = vmatprep.subr.mxu0 0.0
  %210 = vmatpush1.msra.mxu0 0.0
  %211 = vmatprep.subr.mxu0 0.0
  %212 = vmatpush1.msra.mxu0 0.0
  %213 = vmatprep.subr.mxu0 0.0
  %214 = vmatpush1.msra.mxu0 0.0
  %215 = vmatprep.subr.mxu0 0.0
  %216 = vmatpush1.msra.mxu0 0.0
  %217 = vmatprep.subr.mxu0 0.0
  %218 = vmatpush1.msra.mxu0 0.0
  %219 = vmatprep.subr.mxu0 0.0
  %220 = vmatpush1.msra.mxu0 %v181
  %221 = vmatprep.subr.mxu0 0.0
  %222 = vmatpush1.msra.mxu0 %v180
  %223 = vmatprep.subr.mxu0 0.0
  %224 = vmatpush1.msra.mxu0 %v179
  %225 = vmatprep.subr.mxu0 0.0
  %226 = vmatpush1.msra.mxu0 %v178
  %227 = vmatprep.subr.mxu0 0.0
  %228 = vmatpush2.msra.mxu0 0.0
  %229 = vmatprep.subr.mxu0 0.0
  %230 = vmatpush2.msra.mxu0 0.0
  %231 = vmatprep.subr.mxu0 0.0
  %232 = vmatpush2.msra.mxu0 0.0
  %233 = vmatprep.subr.mxu0 0.0
  %234 = vmatpush2.msra.mxu0 0.0
  %235 = vmatprep.subr.mxu0 0.0
  %236 = vmatpush2.msra.mxu0 0.0
  %237 = vmatprep.subr.mxu0 0.0
  %238 = vmatpush2.msra.mxu0 0.0
  %239 = vmatprep.subr.mxu0 0.0
  %240 = vmatpush2.msra.mxu0 0.0
  %241 = vmatprep.subr.mxu0 0.0
  %242 = vmatpush2.msra.mxu0 0.0
  %243 = vmatprep.subr.mxu0 0.0
  %244 = vmatpush2.msra.mxu0 0.0
  %245 = vmatprep.subr.mxu0 0.0
  %246 = vmatpush2.msra.mxu0 0.0
  %247 = vmatprep.subr.mxu0 0.0
  %248 = vmatpush2.msra.mxu0 0.0
  %249 = vmatprep.subr.mxu0 0.0
  %250 = vmatpush2.msra.mxu0 0.0
  %251 = vmatprep.subr.mxu0 0.0
  %252 = vmatpush2.msra.mxu0 0.0
  %253 = vmatprep.subr.mxu0 0.0
  %254 = vmatpush2.msra.mxu0 0.0
  %255 = vmatprep.subr.mxu0 0.0
  %256 = vmatpush2.msra.mxu0 0.0
  %257 = vmatprep.subr.mxu0 0.0
  %258 = vmatpush2.msra.mxu0 0.0
  %259 = vmatprep.mubr.f32.mxu0 0.0
  %260 = vmatmul.mubr.f32.gmra.mxu0 %v190
  %v261 = vpop.f32.mrf.mxu0
  %v262 = vadd.f32 %v187, %v261
  %v263 = vpop.f32.mrf.mxu0
  %264 = vmatprep.mubr.f32.mxu0 0.0
  %265 = vmatmul.mubr.f32.gmra.mxu0 %v193
  %v266 = vpop.f32.mrf.mxu0
  %v267 = vadd.f32 %v187, %v266
  %v268 = vpop.f32.mrf.mxu0
  %269 = vdwg.mxu0
  %v270 = vmul.f32 %v262, %v262
  %v271 = vmul.f32 %v267, %v267
  %v272 = vmul.f32 %v262, %v270
  %v273 = vmul.f32 %v267, %v271
  %v274 = vmul.f32 %v272, 0.044715
  %v275 = vmul.f32 %v273, 0.044715
  %v276 = vadd.f32 %v262, %v274
  %v277 = vadd.f32 %v267, %v275
  %v278 = vmul.f32 %v276, 0.7978846
  %v279 = vmul.f32 %v277, 0.7978846
  %v280 = vtanh.pop %v278
  %v281 = vtanh.pop %v279
  %v282 = vadd.f32 %v280, 1.0
  %v283 = vadd.f32 %v281, 1.0
  %v284 = vmul.f32 %v282, 0.5
  %v285 = vmul.f32 %v283, 0.5
  %v286 = vmul.f32 %v262, %v284
  %v287 = vmul.f32 %v267, %v285
  %v288 = vld [vmem:[%s9] sm:$0xff]
  %v289 = vld [vmem:[%s9 + $0x8] sm:$0xff]
  %v290 = vld [vmem:[%s9 + $0x10] sm:$0xff]
  %v291 = vld [vmem:[%s9 + $0x18] sm:$0xff]
  %v292 = vld [vmem:[%s10] sm:$0x1]
  %v294 = vlaneseq
  %v295 = vshrl.u32 %v294, 7
  %v296 = vsub.s32 0, %v295
  %v297 = vrot.slane %v292, %v296
  %v300 = vsel %vm150, %v286, 0
  %v303 = vsel %vm150, %v287, 0
  %305 = vmatprep.subr.mxu0 0.0
  %306 = vmatpush1.msra.mxu0 0.0
  %307 = vmatprep.subr.mxu0 0.0
  %308 = vmatpush1.msra.mxu0 0.0
  %309 = vmatprep.subr.mxu0 0.0
  %310 = vmatpush1.msra.mxu0 0.0
  %311 = vmatprep.subr.mxu0 0.0
  %312 = vmatpush1.msra.mxu0 0.0
  %313 = vmatprep.subr.mxu0 0.0
  %314 = vmatpush1.msra.mxu0 0.0
  %315 = vmatprep.subr.mxu0 0.0
  %316 = vmatpush1.msra.mxu0 0.0
  %317 = vmatprep.subr.mxu0 0.0
  %318 = vmatpush1.msra.mxu0 0.0
  %319 = vmatprep.subr.mxu0 0.0
  %320 = vmatpush1.msra.mxu0 0.0
  %321 = vmatprep.subr.mxu0 0.0
  %322 = vmatpush1.msra.mxu0 0.0
  %323 = vmatprep.subr.mxu0 0.0
  %324 = vmatpush1.msra.mxu0 0.0
  %325 = vmatprep.subr.mxu0 0.0
  %326 = vmatpush1.msra.mxu0 0.0
  %327 = vmatprep.subr.mxu0 0.0
  %328 = vmatpush1.msra.mxu0 0.0
  %329 = vmatprep.subr.mxu0 0.0
  %330 = vmatpush1.msra.mxu0 %v291
  %331 = vmatprep.subr.mxu0 0.0
  %332 = vmatpush1.msra.mxu0 %v290
  %333 = vmatprep.subr.mxu0 0.0
  %334 = vmatpush1.msra.mxu0 %v289
  %335 = vmatprep.subr.mxu0 0.0
  %336 = vmatpush1.msra.mxu0 %v288
  %337 = vmatprep.subr.mxu0 0.0
  %338 = vmatpush2.msra.mxu0 0.0
  %339 = vmatprep.subr.mxu0 0.0
  %340 = vmatpush2.msra.mxu0 0.0
  %341 = vmatprep.subr.mxu0 0.0
  %342 = vmatpush2.msra.mxu0 0.0
  %343 = vmatprep.subr.mxu0 0.0
  %344 = vmatpush2.msra.mxu0 0.0
  %345 = vmatprep.subr.mxu0 0.0
  %346 = vmatpush2.msra.mxu0 0.0
  %347 = vmatprep.subr.mxu0 0.0
  %348 = vmatpush2.msra.mxu0 0.0
  %349 = vmatprep.subr.mxu0 0.0
  %350 = vmatpush2.msra.mxu0 0.0
  %351 = vmatprep.subr.mxu0 0.0
  %352 = vmatpush2.msra.mxu0 0.0
  %353 = vmatprep.subr.mxu0 0.0
  %354 = vmatpush2.msra.mxu0 0.0
  %355 = vmatprep.subr.mxu0 0.0
  %356 = vmatpush2.msra.mxu0 0.0
  %357 = vmatprep.subr.mxu0 0.0
  %358 = vmatpush2.msra.mxu0 0.0
  %359 = vmatprep.subr.mxu0 0.0
  %360 = vmatpush2.msra.mxu0 0.0
  %361 = vmatprep.subr.mxu0 0.0
  %362 = vmatpush2.msra.mxu0 0.0
  %363 = vmatprep.subr.mxu0 0.0
  %364 = vmatpush2.msra.mxu0 0.0
  %365 = vmatprep.subr.mxu0 0.0
  %366 = vmatpush2.msra.mxu0 0.0
  %367 = vmatprep.subr.mxu0 0.0
  %368 = vmatpush2.msra.mxu0 0.0
  %369 = vmatprep.mubr.f32.mxu0 0.0
  %370 = vmatmul.mubr.f32.gmra.mxu0 %v300
  %v371 = vpop.f32.mrf.mxu0
  %v372 = vadd.f32 %v297, %v371
  %v373 = vpop.f32.mrf.mxu0
  %374 = vmatprep.mubr.f32.mxu0 0.0
  %375 = vmatmul.mubr.f32.gmra.mxu0 %v303
  %v376 = vpop.f32.mrf.mxu0
  %v377 = vadd.f32 %v297, %v376
  %v378 = vpop.f32.mrf.mxu0
  %379 = vdwg.mxu0
  %v380 = vld [vmem:[%s11] sm:$0xff]
  %v381 = vld [vmem:[%s11 + $0x8] sm:$0xff]
  %v382 = vld [vmem:[%s11 + $0x10] sm:$0xff]
  %v383 = vld [vmem:[%s11 + $0x18] sm:$0xff]
  %v384 = vld [vmem:[%s12] sm:$0xff]
  %v385 = vld [vmem:[%s12 + $0x8] sm:$0xff]
  %v386 = vld [vmem:[%s12 + $0x10] sm:$0xff]
  %v387 = vld [vmem:[%s12 + $0x18] sm:$0xff]
  %389 = vset.pattern.permute.xlu0 0
  %390 = vperm.xlu0 %389, %v384
  %v391 = vpop.permute.xlu0 %390
  %394 = vset.pattern.permute.xlu0 0
  %395 = vperm.xlu0 %394, %v385
  %v396 = vpop.permute.xlu0 %395
  %399 = vset.pattern.permute.xlu0 0
  %400 = vperm.xlu0 %399, %v386
  %v401 = vpop.permute.xlu0 %400
  %404 = vset.pattern.permute.xlu0 0
  %405 = vperm.xlu0 %404, %v387
  %v406 = vpop.permute.xlu0 %405
  %v409 = vcombine.high %v144, %v144
  %vm410 = vcmask 31744
  %v412 = vsel %vm410, %v380, 0
  %v415 = vsel %vm410, %v381, 0
  %v418 = vsel %vm410, %v382, 0
  %v421 = vsel %vm410, %v383, 0
  %vm423 = vcmask 1043456
  %v424 = vsel %vm423, %v144, 0
  %v426 = vsel %vm423, %v409, 0
  %428 = vmatprep.subr.mxu0 0.0
  %429 = vmatpush1.msra.mxu0 0.0
  %430 = vmatprep.subr.mxu0 0.0
  %431 = vmatpush1.msra.mxu0 0.0
  %432 = vmatprep.subr.mxu0 0.0
  %433 = vmatpush1.msra.mxu0 0.0
  %434 = vmatprep.subr.mxu0 0.0
  %435 = vmatpush1.msra.mxu0 0.0
  %436 = vmatprep.subr.mxu0 0.0
  %437 = vmatpush1.msra.mxu0 0.0
  %438 = vmatprep.subr.mxu0 0.0
  %439 = vmatpush1.msra.mxu0 0.0
  %440 = vmatprep.subr.mxu0 0.0
  %441 = vmatpush1.msra.mxu0 0.0
  %442 = vmatprep.subr.mxu0 0.0
  %443 = vmatpush1.msra.mxu0 0.0
  %444 = vmatprep.subr.mxu0 0.0
  %445 = vmatpush1.msra.mxu0 0.0
  %446 = vmatprep.subr.mxu0 0.0
  %447 = vmatpush1.msra.mxu0 0.0
  %448 = vmatprep.subr.mxu0 0.0
  %449 = vmatpush1.msra.mxu0 0.0
  %450 = vmatprep.subr.mxu0 0.0
  %451 = vmatpush1.msra.mxu0 0.0
  %452 = vmatprep.subr.mxu0 0.0
  %453 = vmatpush1.msra.mxu0 0.0
  %454 = vmatprep.subr.mxu0 0.0
  %455 = vmatpush1.msra.mxu0 0.0
  %456 = vmatprep.subr.mxu0 0.0
  %457 = vmatpush1.msra.mxu0 0.0
  %458 = vmatprep.subr.mxu0 %v426
  %459 = vmatpush1.msra.mxu0 %v424
  %460 = vmatprep.subr.mxu0 0.0
  %461 = vmatpush2.msra.mxu0 0.0
  %462 = vmatprep.subr.mxu0 0.0
  %463 = vmatpush2.msra.mxu0 0.0
  %464 = vmatprep.subr.mxu0 0.0
  %465 = vmatpush2.msra.mxu0 0.0
  %466 = vmatprep.subr.mxu0 0.0
  %467 = vmatpush2.msra.mxu0 0.0
  %468 = vmatprep.subr.mxu0 0.0
  %469 = vmatpush2.msra.mxu0 0.0
  %470 = vmatprep.subr.mxu0 0.0
  %471 = vmatpush2.msra.mxu0 0.0
  %472 = vmatprep.subr.mxu0 0.0
  %473 = vmatpush2.msra.mxu0 0.0
  %474 = vmatprep.subr.mxu0 0.0
  %475 = vmatpush2.msra.mxu0 0.0
  %476 = vmatprep.subr.mxu0 0.0
  %477 = vmatpush2.msra.mxu0 0.0
  %478 = vmatprep.subr.mxu0 0.0
  %479 = vmatpush2.msra.mxu0 0.0
  %480 = vmatprep.subr.mxu0 0.0
  %481 = vmatpush2.msra.mxu0 0.0
  %482 = vmatprep.subr.mxu0 0.0
  %483 = vmatpush2.msra.mxu0 0.0
  %484 = vmatprep.subr.mxu0 0.0
  %485 = vmatpush2.msra.mxu0 0.0
  %486 = vmatprep.subr.mxu0 0.0
  %487 = vmatpush2.msra.mxu0 0.0
  %488 = vmatprep.subr.mxu0 0.0
  %489 = vmatpush2.msra.mxu0 0.0
  %490 = vmatprep.subr.mxu0 0.0
  %491 = vmatpush2.msra.mxu0 0.0
  %492 = vmatprep.mubr.f32.mxu0 0.0
  %493 = vmatmul.mubr.f32.gmra.mxu0 %v412
  %v494 = vpop.f32.mrf.mxu0
  %v495 = vadd.f32 %v391, %v494
  %v496 = vpop.f32.mrf.mxu0
  %v497 = vadd.f32 %v391, %v496
  %498 = vmatprep.mubr.f32.mxu0 0.0
  %499 = vmatmul.mubr.f32.gmra.mxu0 %v415
  %v500 = vpop.f32.mrf.mxu0
  %v501 = vadd.f32 %v396, %v500
  %v502 = vpop.f32.mrf.mxu0
  %v503 = vadd.f32 %v396, %v502
  %504 = vmatprep.mubr.f32.mxu0 0.0
  %505 = vmatmul.mubr.f32.gmra.mxu0 %v418
  %v506 = vpop.f32.mrf.mxu0
  %v507 = vadd.f32 %v401, %v506
  %v508 = vpop.f32.mrf.mxu0
  %v509 = vadd.f32 %v401, %v508
  %510 = vmatprep.mubr.f32.mxu0 0.0
  %511 = vmatmul.mubr.f32.gmra.mxu0 %v421
  %v512 = vpop.f32.mrf.mxu0
  %v513 = vadd.f32 %v406, %v512
  %v514 = vpop.f32.mrf.mxu0
  %v515 = vadd.f32 %v406, %v514
  %516 = vdwg.mxu0
  %v517 = vld [vmem:[%s6] sm:$0xff]
  %v518 = vld [vmem:[%s6 + $0x8] sm:$0xff]
  %v519 = vld [vmem:[%s6 + $0x10] sm:$0xff]
  %v520 = vld [vmem:[%s6 + $0x18] sm:$0xff]
  %522 = vset.pattern.permute.xlu0 0
  %523 = vperm.xlu0 %522, %v517
  %v524 = vpop.permute.xlu0 %523
  %527 = vset.pattern.permute.xlu0 0
  %528 = vperm.xlu0 %527, %v518
  %v529 = vpop.permute.xlu0 %528
  %532 = vset.pattern.permute.xlu0 0
  %533 = vperm.xlu0 %532, %v519
  %v534 = vpop.permute.xlu0 %533
  %537 = vset.pattern.permute.xlu0 0
  %538 = vperm.xlu0 %537, %v520
  %v539 = vpop.permute.xlu0 %538
  %v541 = vadd.f32 %v495, %v524
  %v542 = vadd.f32 %v497, %v524
  %v543 = vadd.f32 %v501, %v529
  %v544 = vadd.f32 %v503, %v529
  %v545 = vadd.f32 %v507, %v534
  %v546 = vadd.f32 %v509, %v534
  %v547 = vadd.f32 %v513, %v539
  %v548 = vadd.f32 %v515, %v539
  %v549 = vxor.u32 %v541, 2147483648
  %v550 = vxor.u32 %v542, 2147483648
  %v551 = vxor.u32 %v543, 2147483648
  %v552 = vxor.u32 %v544, 2147483648
  %v553 = vxor.u32 %v545, 2147483648
  %v554 = vxor.u32 %v546, 2147483648
  %v555 = vxor.u32 %v547, 2147483648
  %v556 = vxor.u32 %v548, 2147483648
  %v557 = vmul.f32 %v549, 1.442695
  %v558 = vpow.pop %v557
  %v559 = vmul.f32 %v550, 1.442695
  %v560 = vpow.pop %v559
  %v561 = vmul.f32 %v551, 1.442695
  %v562 = vpow.pop %v561
  %v563 = vmul.f32 %v552, 1.442695
  %v564 = vpow.pop %v563
  %v565 = vmul.f32 %v553, 1.442695
  %v566 = vpow.pop %v565
  %v567 = vmul.f32 %v554, 1.442695
  %v568 = vpow.pop %v567
  %v569 = vmul.f32 %v555, 1.442695
  %v570 = vpow.pop %v569
  %v571 = vmul.f32 %v556, 1.442695
  %v572 = vpow.pop %v571
  %v573 = vadd.f32 %v558, 1.0
  %v574 = vadd.f32 %v560, 1.0
  %v575 = vadd.f32 %v562, 1.0
  %v576 = vadd.f32 %v564, 1.0
  %v577 = vadd.f32 %v566, 1.0
  %v578 = vadd.f32 %v568, 1.0
  %v579 = vadd.f32 %v570, 1.0
  %v580 = vadd.f32 %v572, 1.0
  %v581 = vrcp.pop %v573
  %v582 = vmul.f32 1.0, %v581
  %v583 = vrcp.pop %v574
  %v584 = vmul.f32 1.0, %v583
  %v585 = vrcp.pop %v575
  %v586 = vmul.f32 1.0, %v585
  %v587 = vrcp.pop %v576
  %v588 = vmul.f32 1.0, %v587
  %v589 = vrcp.pop %v577
  %v590 = vmul.f32 1.0, %v589
  %v591 = vrcp.pop %v578
  %v592 = vmul.f32 1.0, %v591
  %v593 = vrcp.pop %v579
  %v594 = vmul.f32 1.0, %v593
  %v595 = vrcp.pop %v580
  %v596 = vmul.f32 1.0, %v595
  %v597 = vmul.f32 %v541, %v582
  %v598 = vmul.f32 %v542, %v584
  %v599 = vmul.f32 %v543, %v586
  %v600 = vmul.f32 %v544, %v588
  %v601 = vmul.f32 %v545, %v590
  %v602 = vmul.f32 %v546, %v592
  %v603 = vmul.f32 %v547, %v594
  %v604 = vmul.f32 %v548, %v596
  %v605 = vld [vmem:[%s13] sm:$0xff]
  %v606 = vld [vmem:[%s13 + $0x8] sm:$0xff]
  %v607 = vld [vmem:[%s13 + $0x10] sm:$0xff]
  %v608 = vld [vmem:[%s13 + $0x18] sm:$0xff]
  %v610 = vsel %vm150, %v605, 0
  %v613 = vsel %vm150, %v606, 0
  %v616 = vsel %vm150, %v607, 0
  %v619 = vsel %vm150, %v608, 0
  %621 = vmatprep.subr.mxu0 0.0
  %622 = vmatpush1.msra.mxu0 0.0
  %623 = vmatprep.subr.mxu0 0.0
  %624 = vmatpush1.msra.mxu0 0.0
  %625 = vmatprep.subr.mxu0 0.0
  %626 = vmatpush1.msra.mxu0 0.0
  %627 = vmatprep.subr.mxu0 0.0
  %628 = vmatpush1.msra.mxu0 0.0
  %629 = vmatprep.subr.mxu0 0.0
  %630 = vmatpush1.msra.mxu0 0.0
  %631 = vmatprep.subr.mxu0 0.0
  %632 = vmatpush1.msra.mxu0 0.0
  %633 = vmatprep.subr.mxu0 0.0
  %634 = vmatpush1.msra.mxu0 0.0
  %635 = vmatprep.subr.mxu0 0.0
  %636 = vmatpush1.msra.mxu0 0.0
  %637 = vmatprep.subr.mxu0 0.0
  %638 = vmatpush1.msra.mxu0 0.0
  %639 = vmatprep.subr.mxu0 0.0
  %640 = vmatpush1.msra.mxu0 0.0
  %641 = vmatprep.subr.mxu0 0.0
  %642 = vmatpush1.msra.mxu0 0.0
  %643 = vmatprep.subr.mxu0 0.0
  %644 = vmatpush1.msra.mxu0 0.0
  %645 = vmatprep.subr.mxu0 %v604
  %646 = vmatpush1.msra.mxu0 %v603
  %647 = vmatprep.subr.mxu0 %v602
  %648 = vmatpush1.msra.mxu0 %v601
  %649 = vmatprep.subr.mxu0 %v600
  %650 = vmatpush1.msra.mxu0 %v599
  %651 = vmatprep.subr.mxu0 %v598
  %652 = vmatpush1.msra.mxu0 %v597
  %653 = vmatprep.subr.mxu0 0.0
  %654 = vmatpush2.msra.mxu0 0.0
  %655 = vmatprep.subr.mxu0 0.0
  %656 = vmatpush2.msra.mxu0 0.0
  %657 = vmatprep.subr.mxu0 0.0
  %658 = vmatpush2.msra.mxu0 0.0
  %659 = vmatprep.subr.mxu0 0.0
  %660 = vmatpush2.msra.mxu0 0.0
  %661 = vmatprep.subr.mxu0 0.0
  %662 = vmatpush2.msra.mxu0 0.0
  %663 = vmatprep.subr.mxu0 0.0
  %664 = vmatpush2.msra.mxu0 0.0
  %665 = vmatprep.subr.mxu0 0.0
  %666 = vmatpush2.msra.mxu0 0.0
  %667 = vmatprep.subr.mxu0 0.0
  %668 = vmatpush2.msra.mxu0 0.0
  %669 = vmatprep.subr.mxu0 0.0
  %670 = vmatpush2.msra.mxu0 0.0
  %671 = vmatprep.subr.mxu0 0.0
  %672 = vmatpush2.msra.mxu0 0.0
  %673 = vmatprep.subr.mxu0 0.0
  %674 = vmatpush2.msra.mxu0 0.0
  %675 = vmatprep.subr.mxu0 0.0
  %676 = vmatpush2.msra.mxu0 0.0
  %677 = vmatprep.subr.mxu0 0.0
  %678 = vmatpush2.msra.mxu0 0.0
  %679 = vmatprep.subr.mxu0 0.0
  %680 = vmatpush2.msra.mxu0 0.0
  %681 = vmatprep.subr.mxu0 0.0
  %682 = vmatpush2.msra.mxu0 0.0
  %683 = vmatprep.subr.mxu0 0.0
  %684 = vmatpush2.msra.mxu0 0.0
  %685 = vmatprep.mubr.f32.mxu0 0.0
  %686 = vmatmul.mubr.f32.gmra.mxu0 %v610
  %v687 = vpop.f32.mrf.mxu0
  %v688 = vadd.f32 0.0, %v687
  %v689 = vpop.f32.mrf.mxu0
  %v690 = vadd.f32 0.0, %v689
  %691 = vmatprep.mubr.f32.mxu0 0.0
  %692 = vmatmul.mubr.f32.gmra.mxu0 %v613
  %v693 = vpop.f32.mrf.mxu0
  %v694 = vadd.f32 0.0, %v693
  %v695 = vpop.f32.mrf.mxu0
  %v696 = vadd.f32 0.0, %v695
  %697 = vmatprep.mubr.f32.mxu0 0.0
  %698 = vmatmul.mubr.f32.gmra.mxu0 %v616
  %v699 = vpop.f32.mrf.mxu0
  %v700 = vadd.f32 0.0, %v699
  %v701 = vpop.f32.mrf.mxu0
  %v702 = vadd.f32 0.0, %v701
  %703 = vmatprep.mubr.f32.mxu0 0.0
  %704 = vmatmul.mubr.f32.gmra.mxu0 %v619
  %v705 = vpop.f32.mrf.mxu0
  %v706 = vadd.f32 0.0, %v705
  %v707 = vpop.f32.mrf.mxu0
  %v708 = vadd.f32 0.0, %v707
  %709 = vdwg.mxu0
  %v710 = vld [vmem:[%s14] sm:$0xff]
  %v711 = vld [vmem:[%s14 + $0x8] sm:$0xff]
  %v712 = vld [vmem:[%s14 + $0x10] sm:$0xff]
  %v713 = vld [vmem:[%s14 + $0x18] sm:$0xff]
  %v715 = vsel %vm150, %v372, 0
  %717 = vmatprep.subr.mxu0 0.0
  %718 = vmatpush1.msra.mxu0 0.0
  %719 = vmatprep.subr.mxu0 0.0
  %720 = vmatpush1.msra.mxu0 0.0
  %721 = vmatprep.subr.mxu0 0.0
  %722 = vmatpush1.msra.mxu0 0.0
  %723 = vmatprep.subr.mxu0 0.0
  %724 = vmatpush1.msra.mxu0 0.0
  %725 = vmatprep.subr.mxu0 0.0
  %726 = vmatpush1.msra.mxu0 0.0
  %727 = vmatprep.subr.mxu0 0.0
  %728 = vmatpush1.msra.mxu0 0.0
  %729 = vmatprep.subr.mxu0 0.0
  %730 = vmatpush1.msra.mxu0 0.0
  %731 = vmatprep.subr.mxu0 0.0
  %732 = vmatpush1.msra.mxu0 0.0
  %733 = vmatprep.subr.mxu0 0.0
  %734 = vmatpush1.msra.mxu0 0.0
  %735 = vmatprep.subr.mxu0 0.0
  %736 = vmatpush1.msra.mxu0 0.0
  %737 = vmatprep.subr.mxu0 0.0
  %738 = vmatpush1.msra.mxu0 0.0
  %739 = vmatprep.subr.mxu0 0.0
  %740 = vmatpush1.msra.mxu0 0.0
  %741 = vmatprep.subr.mxu0 0.0
  %742 = vmatpush1.msra.mxu0 %v713
  %743 = vmatprep.subr.mxu0 0.0
  %744 = vmatpush1.msra.mxu0 %v712
  %745 = vmatprep.subr.mxu0 0.0
  %746 = vmatpush1.msra.mxu0 %v711
  %747 = vmatprep.subr.mxu0 0.0
  %748 = vmatpush1.msra.mxu0 %v710
  %749 = vmatprep.subr.mxu0 0.0
  %750 = vmatpush2.msra.mxu0 0.0
  %751 = vmatprep.subr.mxu0 0.0
  %752 = vmatpush2.msra.mxu0 0.0
  %753 = vmatprep.subr.mxu0 0.0
  %754 = vmatpush2.msra.mxu0 0.0
  %755 = vmatprep.subr.mxu0 0.0
  %756 = vmatpush2.msra.mxu0 0.0
  %757 = vmatprep.subr.mxu0 0.0
  %758 = vmatpush2.msra.mxu0 0.0
  %759 = vmatprep.subr.mxu0 0.0
  %760 = vmatpush2.msra.mxu0 0.0
  %761 = vmatprep.subr.mxu0 0.0
  %762 = vmatpush2.msra.mxu0 0.0
  %763 = vmatprep.subr.mxu0 0.0
  %764 = vmatpush2.msra.mxu0 0.0
  %765 = vmatprep.subr.mxu0 0.0
  %766 = vmatpush2.msra.mxu0 0.0
  %767 = vmatprep.subr.mxu0 0.0
  %768 = vmatpush2.msra.mxu0 0.0
  %769 = vmatprep.subr.mxu0 0.0
  %770 = vmatpush2.msra.mxu0 0.0
  %771 = vmatprep.subr.mxu0 0.0
  %772 = vmatpush2.msra.mxu0 0.0
  %773 = vmatprep.subr.mxu0 0.0
  %774 = vmatpush2.msra.mxu0 0.0
  %775 = vmatprep.subr.mxu0 0.0
  %776 = vmatpush2.msra.mxu0 0.0
  %777 = vmatprep.subr.mxu0 0.0
  %778 = vmatpush2.msra.mxu0 0.0
  %779 = vmatprep.subr.mxu0 0.0
  %780 = vmatpush2.msra.mxu0 0.0
  %781 = vmatprep.mubr.f32.mxu0 0.0
  %782 = vmatmul.mubr.f32.gmra.mxu0 %v715
  %v783 = vpop.f32.mrf.mxu0
  %v784 = vadd.f32 0.0, %v783
  %v785 = vpop.f32.mrf.mxu0
  %786 = vdwg.mxu0
  %v787 = vld [vmem:[%s15] sm:$0xff]
  %v788 = vld [vmem:[%s15 + $0x8] sm:$0xff]
  %v789 = vld [vmem:[%s15 + $0x10] sm:$0xff]
  %v790 = vld [vmem:[%s15 + $0x18] sm:$0xff]
  %791 = vmatprep.subr.mxu0 0.0
  %792 = vmatpush1.msra.mxu0 0.0
  %793 = vmatprep.subr.mxu0 0.0
  %794 = vmatpush1.msra.mxu0 0.0
  %795 = vmatprep.subr.mxu0 0.0
  %796 = vmatpush1.msra.mxu0 0.0
  %797 = vmatprep.subr.mxu0 0.0
  %798 = vmatpush1.msra.mxu0 0.0
  %799 = vmatprep.subr.mxu0 0.0
  %800 = vmatpush1.msra.mxu0 0.0
  %801 = vmatprep.subr.mxu0 0.0
  %802 = vmatpush1.msra.mxu0 0.0
  %803 = vmatprep.subr.mxu0 0.0
  %804 = vmatpush1.msra.mxu0 0.0
  %805 = vmatprep.subr.mxu0 0.0
  %806 = vmatpush1.msra.mxu0 0.0
  %807 = vmatprep.subr.mxu0 0.0
  %808 = vmatpush1.msra.mxu0 0.0
  %809 = vmatprep.subr.mxu0 0.0
  %810 = vmatpush1.msra.mxu0 0.0
  %811 = vmatprep.subr.mxu0 0.0
  %812 = vmatpush1.msra.mxu0 0.0
  %813 = vmatprep.subr.mxu0 0.0
  %814 = vmatpush1.msra.mxu0 0.0
  %815 = vmatprep.subr.mxu0 0.0
  %816 = vmatpush1.msra.mxu0 %v790
  %817 = vmatprep.subr.mxu0 0.0
  %818 = vmatpush1.msra.mxu0 %v789
  %819 = vmatprep.subr.mxu0 0.0
  %820 = vmatpush1.msra.mxu0 %v788
  %821 = vmatprep.subr.mxu0 0.0
  %822 = vmatpush1.msra.mxu0 %v787
  %823 = vmatprep.subr.mxu0 0.0
  %824 = vmatpush2.msra.mxu0 0.0
  %825 = vmatprep.subr.mxu0 0.0
  %826 = vmatpush2.msra.mxu0 0.0
  %827 = vmatprep.subr.mxu0 0.0
  %828 = vmatpush2.msra.mxu0 0.0
  %829 = vmatprep.subr.mxu0 0.0
  %830 = vmatpush2.msra.mxu0 0.0
  %831 = vmatprep.subr.mxu0 0.0
  %832 = vmatpush2.msra.mxu0 0.0
  %833 = vmatprep.subr.mxu0 0.0
  %834 = vmatpush2.msra.mxu0 0.0
  %835 = vmatprep.subr.mxu0 0.0
  %836 = vmatpush2.msra.mxu0 0.0
  %837 = vmatprep.subr.mxu0 0.0
  %838 = vmatpush2.msra.mxu0 0.0
  %839 = vmatprep.subr.mxu0 0.0
  %840 = vmatpush2.msra.mxu0 0.0
  %841 = vmatprep.subr.mxu0 0.0
  %842 = vmatpush2.msra.mxu0 0.0
  %843 = vmatprep.subr.mxu0 0.0
  %844 = vmatpush2.msra.mxu0 0.0
  %845 = vmatprep.subr.mxu0 0.0
  %846 = vmatpush2.msra.mxu0 0.0
  %847 = vmatprep.subr.mxu0 0.0
  %848 = vmatpush2.msra.mxu0 0.0
  %849 = vmatprep.subr.mxu0 0.0
  %850 = vmatpush2.msra.mxu0 0.0
  %851 = vmatprep.subr.mxu0 0.0
  %852 = vmatpush2.msra.mxu0 0.0
  %853 = vmatprep.subr.mxu0 0.0
  %854 = vmatpush2.msra.mxu0 0.0
  %855 = vmatprep.mubr.f32.mxu0 0.0
  %856 = vmatmul.mubr.f32.gmra.mxu0 %v715
  %v857 = vpop.f32.mrf.mxu0
  %v858 = vadd.f32 0.0, %v857
  %v859 = vpop.f32.mrf.mxu0
  %860 = vdwg.mxu0
  %v862 = vsel %vm150, %v784, 0
  %864 = vmatprep.subr.mxu0 0.0
  %865 = vmatpush1.msra.mxu0 0.0
  %866 = vmatprep.subr.mxu0 0.0
  %867 = vmatpush1.msra.mxu0 0.0
  %868 = vmatprep.subr.mxu0 0.0
  %869 = vmatpush1.msra.mxu0 0.0
  %870 = vmatprep.subr.mxu0 0.0
  %871 = vmatpush1.msra.mxu0 0.0
  %872 = vmatprep.subr.mxu0 0.0
  %873 = vmatpush1.msra.mxu0 0.0
  %874 = vmatprep.subr.mxu0 0.0
  %875 = vmatpush1.msra.mxu0 0.0
  %876 = vmatprep.subr.mxu0 0.0
  %877 = vmatpush1.msra.mxu0 0.0
  %878 = vmatprep.subr.mxu0 0.0
  %879 = vmatpush1.msra.mxu0 0.0
  %880 = vmatprep.subr.mxu0 0.0
  %881 = vmatpush1.msra.mxu0 0.0
  %882 = vmatprep.subr.mxu0 0.0
  %883 = vmatpush1.msra.mxu0 0.0
  %884 = vmatprep.subr.mxu0 0.0
  %885 = vmatpush1.msra.mxu0 0.0
  %886 = vmatprep.subr.mxu0 0.0
  %887 = vmatpush1.msra.mxu0 0.0
  %888 = vmatprep.subr.mxu0 %v708
  %889 = vmatpush1.msra.mxu0 %v706
  %890 = vmatprep.subr.mxu0 %v702
  %891 = vmatpush1.msra.mxu0 %v700
  %892 = vmatprep.subr.mxu0 %v696
  %893 = vmatpush1.msra.mxu0 %v694
  %894 = vmatprep.subr.mxu0 %v690
  %895 = vmatpush1.msra.mxu0 %v688
  %896 = vmatprep.subr.mxu0 0.0
  %897 = vmatpush2.msra.mxu0 0.0
  %898 = vmatprep.subr.mxu0 0.0
  %899 = vmatpush2.msra.mxu0 0.0
  %900 = vmatprep.subr.mxu0 0.0
  %901 = vmatpush2.msra.mxu0 0.0
  %902 = vmatprep.subr.mxu0 0.0
  %903 = vmatpush2.msra.mxu0 0.0
  %904 = vmatprep.subr.mxu0 0.0
  %905 = vmatpush2.msra.mxu0 0.0
  %906 = vmatprep.subr.mxu0 0.0
  %907 = vmatpush2.msra.mxu0 0.0
  %908 = vmatprep.subr.mxu0 0.0
  %909 = vmatpush2.msra.mxu0 0.0
  %910 = vmatprep.subr.mxu0 0.0
  %911 = vmatpush2.msra.mxu0 0.0
  %912 = vmatprep.subr.mxu0 0.0
  %913 = vmatpush2.msra.mxu0 0.0
  %914 = vmatprep.subr.mxu0 0.0
  %915 = vmatpush2.msra.mxu0 0.0
  %916 = vmatprep.subr.mxu0 0.0
  %917 = vmatpush2.msra.mxu0 0.0
  %918 = vmatprep.subr.mxu0 0.0
  %919 = vmatpush2.msra.mxu0 0.0
  %920 = vmatprep.subr.mxu0 0.0
  %921 = vmatpush2.msra.mxu0 0.0
  %922 = vmatprep.subr.mxu0 0.0
  %923 = vmatpush2.msra.mxu0 0.0
  %924 = vmatprep.subr.mxu0 0.0
  %925 = vmatpush2.msra.mxu0 0.0
  %926 = vmatprep.subr.mxu0 0.0
  %927 = vmatpush2.msra.mxu0 0.0
  %928 = vmatprep.mubr.f32.mxu0 0.0
  %929 = vmatmul.mubr.f32.gmra.mxu0 %v862
  %v930 = vpop.f32.mrf.mxu0
  %v931 = vadd.f32 0.0, %v930
  %v932 = vpop.f32.mrf.mxu0
  %v933 = vadd.f32 0.0, %v932
  %934 = vdwg.mxu0
  %v935 = vmul.f32 %v931, 0.17677669
  %v936 = vmul.f32 %v933, 0.17677669
  %v937 = vrot.slane %v935, 4
  %v938 = vmax.f32 %v935, %v937
  %v939 = vrot.slane %v938, 2
  %v940 = vmax.f32 %v938, %v939
  %v941 = vrot.slane %v940, 1
  %v942 = vmax.f32 %v940, %v941
  %v943 = vrot.slane %v936, 4
  %v944 = vmax.f32 %v936, %v943
  %v945 = vrot.slane %v944, 2
  %v946 = vmax.f32 %v944, %v945
  %v947 = vrot.slane %v946, 1
  %v948 = vmax.f32 %v946, %v947
  %v949 = vsub.f32 %v935, %v942
  %v950 = vsub.f32 %v936, %v948
  %v951 = vmul.f32 %v949, 1.442695
  %v952 = vpow.pop %v951
  %v953 = vmul.f32 %v950, 1.442695
  %v954 = vpow.pop %v953
  %v955 = vrot.slane %v952, 4
  %v956 = vadd.f32 %v952, %v955
  %v957 = vrot.slane %v956, 2
  %v958 = vadd.f32 %v956, %v957
  %v959 = vrot.slane %v958, 1
  %v960 = vadd.f32 %v958, %v959
  %v961 = vrot.slane %v954, 4
  %v962 = vadd.f32 %v954, %v961
  %v963 = vrot.slane %v962, 2
  %v964 = vadd.f32 %v962, %v963
  %v965 = vrot.slane %v964, 1
  %v966 = vadd.f32 %v964, %v965
  %v967 = vrcp.pop %v960
  %v968 = vrcp.pop %v966
  %v969 = vmul.f32 %v952, %v967
  %v970 = vmul.f32 %v954, %v968
  %971 = vxpose.xlu0.b32.start [1/16] %v858, 128
  %972 = vxpose.xlu0.b32.cont [2/16] 0.0, 128
  %973 = vxpose.xlu0.b32.cont [3/16] 0.0, 128
  %974 = vxpose.xlu0.b32.cont [4/16] 0.0, 128
  %975 = vxpose.xlu0.b32.cont [5/16] 0.0, 128
  %976 = vxpose.xlu0.b32.cont [6/16] 0.0, 128
  %977 = vxpose.xlu0.b32.cont [7/16] 0.0, 128
  %978 = vxpose.xlu0.b32.cont [8/16] 0.0, 128
  %979 = vxpose.xlu0.b32.cont [9/16] 0.0, 128
  %980 = vxpose.xlu0.b32.cont [10/16] 0.0, 128
  %981 = vxpose.xlu0.b32.cont [11/16] 0.0, 128
  %982 = vxpose.xlu0.b32.cont [12/16] 0.0, 128
  %983 = vxpose.xlu0.b32.cont [13/16] 0.0, 128
  %984 = vxpose.xlu0.b32.cont [14/16] 0.0, 128
  %985 = vxpose.xlu0.b32.cont [15/16] 0.0, 128
  %986 = vxpose.xlu0.b32.end [16/16] 0.0, 128
  %v987 = vpop.trf.xlu0
  %v988 = vpop.trf.xlu0
  %v989 = vpop.trf.xlu0
  %v990 = vpop.trf.xlu0
  %v991 = vpop.trf.xlu0
  %v992 = vpop.trf.xlu0
  %v993 = vpop.trf.xlu0
  %v994 = vpop.trf.xlu0
  %v995 = vpop.trf.xlu0
  %v996 = vpop.trf.xlu0
  %v997 = vpop.trf.xlu0
  %v998 = vpop.trf.xlu0
  %v999 = vpop.trf.xlu0
  %v1000 = vpop.trf.xlu0
  %v1001 = vpop.trf.xlu0
  %v1002 = vpop.trf.xlu0
  %vm1003 = vcmask 64512
  %v1005 = vsel %vm1003, %v987, 0
  %v1008 = vsel %vm1003, %v988, 0
  %v1011 = vsel %vm1003, %v989, 0
  %v1014 = vsel %vm1003, %v990, 0
  %1016 = vmatprep.subr.mxu0 0.0
  %1017 = vmatpush1.msra.mxu0 0.0
  %1018 = vmatprep.subr.mxu0 0.0
  %1019 = vmatpush1.msra.mxu0 0.0
  %1020 = vmatprep.subr.mxu0 0.0
  %1021 = vmatpush1.msra.mxu0 0.0
  %1022 = vmatprep.subr.mxu0 0.0
  %1023 = vmatpush1.msra.mxu0 0.0
  %1024 = vmatprep.subr.mxu0 0.0
  %1025 = vmatpush1.msra.mxu0 0.0
  %1026 = vmatprep.subr.mxu0 0.0
  %1027 = vmatpush1.msra.mxu0 0.0
  %1028 = vmatprep.subr.mxu0 0.0
  %1029 = vmatpush1.msra.mxu0 0.0
  %1030 = vmatprep.subr.mxu0 0.0
  %1031 = vmatpush1.msra.mxu0 0.0
  %1032 = vmatprep.subr.mxu0 0.0
  %1033 = vmatpush1.msra.mxu0 0.0
  %1034 = vmatprep.subr.mxu0 0.0
  %1035 = vmatpush1.msra.mxu0 0.0
  %1036 = vmatprep.subr.mxu0 0.0
  %1037 = vmatpush1.msra.mxu0 0.0
  %1038 = vmatprep.subr.mxu0 0.0
  %1039 = vmatpush1.msra.mxu0 0.0
  %1040 = vmatprep.subr.mxu0 0.0
  %1041 = vmatpush1.msra.mxu0 0.0
  %1042 = vmatprep.subr.mxu0 0.0
  %1043 = vmatpush1.msra.mxu0 0.0
  %1044 = vmatprep.subr.mxu0 0.0
  %1045 = vmatpush1.msra.mxu0 0.0
  %1046 = vmatprep.subr.mxu0 %v970
  %1047 = vmatpush1.msra.mxu0 %v969
  %1048 = vmatprep.subr.mxu0 0.0
  %1049 = vmatpush2.msra.mxu0 0.0
  %1050 = vmatprep.subr.mxu0 0.0
  %1051 = vmatpush2.msra.mxu0 0.0
  %1052 = vmatprep.subr.mxu0 0.0
  %1053 = vmatpush2.msra.mxu0 0.0
  %1054 = vmatprep.subr.mxu0 0.0
  %1055 = vmatpush2.msra.mxu0 0.0
  %1056 = vmatprep.subr.mxu0 0.0
  %1057 = vmatpush2.msra.mxu0 0.0
  %1058 = vmatprep.subr.mxu0 0.0
  %1059 = vmatpush2.msra.mxu0 0.0
  %1060 = vmatprep.subr.mxu0 0.0
  %1061 = vmatpush2.msra.mxu0 0.0
  %1062 = vmatprep.subr.mxu0 0.0
  %1063 = vmatpush2.msra.mxu0 0.0
  %1064 = vmatprep.subr.mxu0 0.0
  %1065 = vmatpush2.msra.mxu0 0.0
  %1066 = vmatprep.subr.mxu0 0.0
  %1067 = vmatpush2.msra.mxu0 0.0
  %1068 = vmatprep.subr.mxu0 0.0
  %1069 = vmatpush2.msra.mxu0 0.0
  %1070 = vmatprep.subr.mxu0 0.0
  %1071 = vmatpush2.msra.mxu0 0.0
  %1072 = vmatprep.subr.mxu0 0.0
  %1073 = vmatpush2.msra.mxu0 0.0
  %1074 = vmatprep.subr.mxu0 0.0
  %1075 = vmatpush2.msra.mxu0 0.0
  %1076 = vmatprep.subr.mxu0 0.0
  %1077 = vmatpush2.msra.mxu0 0.0
  %1078 = vmatprep.subr.mxu0 0.0
  %1079 = vmatpush2.msra.mxu0 0.0
  %1080 = vmatprep.mubr.f32.mxu0 0.0
  %1081 = vmatmul.mubr.f32.gmra.mxu0 %v1005
  %v1082 = vpop.f32.mrf.mxu0
  %v1083 = vadd.f32 0.0, %v1082
  %v1084 = vpop.f32.mrf.mxu0
  %v1085 = vadd.f32 0.0, %v1084
  %1086 = vmatprep.mubr.f32.mxu0 0.0
  %1087 = vmatmul.mubr.f32.gmra.mxu0 %v1008
  %v1088 = vpop.f32.mrf.mxu0
  %v1089 = vadd.f32 0.0, %v1088
  %v1090 = vpop.f32.mrf.mxu0
  %v1091 = vadd.f32 0.0, %v1090
  %1092 = vmatprep.mubr.f32.mxu0 0.0
  %1093 = vmatmul.mubr.f32.gmra.mxu0 %v1011
  %v1094 = vpop.f32.mrf.mxu0
  %v1095 = vadd.f32 0.0, %v1094
  %v1096 = vpop.f32.mrf.mxu0
  %v1097 = vadd.f32 0.0, %v1096
  %1098 = vmatprep.mubr.f32.mxu0 0.0
  %1099 = vmatmul.mubr.f32.gmra.mxu0 %v1014
  %v1100 = vpop.f32.mrf.mxu0
  %v1101 = vadd.f32 0.0, %v1100
  %v1102 = vpop.f32.mrf.mxu0
  %v1103 = vadd.f32 0.0, %v1102
  %1104 = vdwg.mxu0
  %v1105 = vld [vmem:[%s16] sm:$0xff]
  %v1106 = vld [vmem:[%s16 + $0x8] sm:$0xff]
  %v1107 = vld [vmem:[%s16 + $0x10] sm:$0xff]
  %v1108 = vld [vmem:[%s16 + $0x18] sm:$0xff]
  %v1110 = vsel %vm150, %v1105, 0
  %v1113 = vsel %vm150, %v1106, 0
  %v1116 = vsel %vm150, %v1107, 0
  %v1119 = vsel %vm150, %v1108, 0
  %1121 = vmatprep.subr.mxu0 0.0
  %1122 = vmatpush1.msra.mxu0 0.0
  %1123 = vmatprep.subr.mxu0 0.0
  %1124 = vmatpush1.msra.mxu0 0.0
  %1125 = vmatprep.subr.mxu0 0.0
  %1126 = vmatpush1.msra.mxu0 0.0
  %1127 = vmatprep.subr.mxu0 0.0
  %1128 = vmatpush1.msra.mxu0 0.0
  %1129 = vmatprep.subr.mxu0 0.0
  %1130 = vmatpush1.msra.mxu0 0.0
  %1131 = vmatprep.subr.mxu0 0.0
  %1132 = vmatpush1.msra.mxu0 0.0
  %1133 = vmatprep.subr.mxu0 0.0
  %1134 = vmatpush1.msra.mxu0 0.0
  %1135 = vmatprep.subr.mxu0 0.0
  %1136 = vmatpush1.msra.mxu0 0.0
  %1137 = vmatprep.subr.mxu0 0.0
  %1138 = vmatpush1.msra.mxu0 0.0
  %1139 = vmatprep.subr.mxu0 0.0
  %1140 = vmatpush1.msra.mxu0 0.0
  %1141 = vmatprep.subr.mxu0 0.0
  %1142 = vmatpush1.msra.mxu0 0.0
  %1143 = vmatprep.subr.mxu0 0.0
  %1144 = vmatpush1.msra.mxu0 0.0
  %1145 = vmatprep.subr.mxu0 %v1103
  %1146 = vmatpush1.msra.mxu0 %v1101
  %1147 = vmatprep.subr.mxu0 %v1097
  %1148 = vmatpush1.msra.mxu0 %v1095
  %1149 = vmatprep.subr.mxu0 %v1091
  %1150 = vmatpush1.msra.mxu0 %v1089
  %1151 = vmatprep.subr.mxu0 %v1085
  %1152 = vmatpush1.msra.mxu0 %v1083
  %1153 = vmatprep.subr.mxu0 0.0
  %1154 = vmatpush2.msra.mxu0 0.0
  %1155 = vmatprep.subr.mxu0 0.0
  %1156 = vmatpush2.msra.mxu0 0.0
  %1157 = vmatprep.subr.mxu0 0.0
  %1158 = vmatpush2.msra.mxu0 0.0
  %1159 = vmatprep.subr.mxu0 0.0
  %1160 = vmatpush2.msra.mxu0 0.0
  %1161 = vmatprep.subr.mxu0 0.0
  %1162 = vmatpush2.msra.mxu0 0.0
  %1163 = vmatprep.subr.mxu0 0.0
  %1164 = vmatpush2.msra.mxu0 0.0
  %1165 = vmatprep.subr.mxu0 0.0
  %1166 = vmatpush2.msra.mxu0 0.0
  %1167 = vmatprep.subr.mxu0 0.0
  %1168 = vmatpush2.msra.mxu0 0.0
  %1169 = vmatprep.subr.mxu0 0.0
  %1170 = vmatpush2.msra.mxu0 0.0
  %1171 = vmatprep.subr.mxu0 0.0
  %1172 = vmatpush2.msra.mxu0 0.0
  %1173 = vmatprep.subr.mxu0 0.0
  %1174 = vmatpush2.msra.mxu0 0.0
  %1175 = vmatprep.subr.mxu0 0.0
  %1176 = vmatpush2.msra.mxu0 0.0
  %1177 = vmatprep.subr.mxu0 0.0
  %1178 = vmatpush2.msra.mxu0 0.0
  %1179 = vmatprep.subr.mxu0 0.0
  %1180 = vmatpush2.msra.mxu0 0.0
  %1181 = vmatprep.subr.mxu0 0.0
  %1182 = vmatpush2.msra.mxu0 0.0
  %1183 = vmatprep.subr.mxu0 0.0
  %1184 = vmatpush2.msra.mxu0 0.0
  %1185 = vmatprep.mubr.f32.mxu0 0.0
  %1186 = vmatmul.mubr.f32.gmra.mxu0 %v1110
  %v1187 = vpop.f32.mrf.mxu0
  %v1188 = vadd.f32 0.0, %v1187
  %v1189 = vpop.f32.mrf.mxu0
  %v1190 = vadd.f32 0.0, %v1189
  %1191 = vmatprep.mubr.f32.mxu0 0.0
  %1192 = vmatmul.mubr.f32.gmra.mxu0 %v1113
  %v1193 = vpop.f32.mrf.mxu0
  %v1194 = vadd.f32 0.0, %v1193
  %v1195 = vpop.f32.mrf.mxu0
  %v1196 = vadd.f32 0.0, %v1195
  %1197 = vmatprep.mubr.f32.mxu0 0.0
  %1198 = vmatmul.mubr.f32.gmra.mxu0 %v1116
  %v1199 = vpop.f32.mrf.mxu0
  %v1200 = vadd.f32 0.0, %v1199
  %v1201 = vpop.f32.mrf.mxu0
  %v1202 = vadd.f32 0.0, %v1201
  %1203 = vmatprep.mubr.f32.mxu0 0.0
  %1204 = vmatmul.mubr.f32.gmra.mxu0 %v1119
  %v1205 = vpop.f32.mrf.mxu0
  %v1206 = vadd.f32 0.0, %v1205
  %v1207 = vpop.f32.mrf.mxu0
  %v1208 = vadd.f32 0.0, %v1207
  %1209 = vdwg.mxu0
  %v1210 = vadd.f32 %v597, %v1188
  %v1211 = vadd.f32 %v598, %v1190
  %v1212 = vadd.f32 %v599, %v1194
  %v1213 = vadd.f32 %v600, %v1196
  %v1214 = vadd.f32 %v601, %v1200
  %v1215 = vadd.f32 %v602, %v1202
  %v1216 = vadd.f32 %v603, %v1206
  %v1217 = vadd.f32 %v604, %v1208
  %v1218 = vld [vmem:[%s17] sm:$0xf]
  %v1219 = vld [vmem:[%s18] sm:$0xf]
  %1221 = vset.pattern.permute.xlu0 0
  %1222 = vperm.xlu0 %1221, %v1219
  %v1223 = vpop.permute.xlu0 %1222
  %v1226 = vsel %vm150, %v1218, 0
  %1228 = vmatprep.subr.mxu0 0.0
  %1229 = vmatpush1.msra.mxu0 0.0
  %1230 = vmatprep.subr.mxu0 0.0
  %1231 = vmatpush1.msra.mxu0 0.0
  %1232 = vmatprep.subr.mxu0 0.0
  %1233 = vmatpush1.msra.mxu0 0.0
  %1234 = vmatprep.subr.mxu0 0.0
  %1235 = vmatpush1.msra.mxu0 0.0
  %1236 = vmatprep.subr.mxu0 0.0
  %1237 = vmatpush1.msra.mxu0 0.0
  %1238 = vmatprep.subr.mxu0 0.0
  %1239 = vmatpush1.msra.mxu0 0.0
  %1240 = vmatprep.subr.mxu0 0.0
  %1241 = vmatpush1.msra.mxu0 0.0
  %1242 = vmatprep.subr.mxu0 0.0
  %1243 = vmatpush1.msra.mxu0 0.0
  %1244 = vmatprep.subr.mxu0 0.0
  %1245 = vmatpush1.msra.mxu0 0.0
  %1246 = vmatprep.subr.mxu0 0.0
  %1247 = vmatpush1.msra.mxu0 0.0
  %1248 = vmatprep.subr.mxu0 0.0
  %1249 = vmatpush1.msra.mxu0 0.0
  %1250 = vmatprep.subr.mxu0 0.0
  %1251 = vmatpush1.msra.mxu0 0.0
  %1252 = vmatprep.subr.mxu0 %v1217
  %1253 = vmatpush1.msra.mxu0 %v1216
  %1254 = vmatprep.subr.mxu0 %v1215
  %1255 = vmatpush1.msra.mxu0 %v1214
  %1256 = vmatprep.subr.mxu0 %v1213
  %1257 = vmatpush1.msra.mxu0 %v1212
  %1258 = vmatprep.subr.mxu0 %v1211
  %1259 = vmatpush1.msra.mxu0 %v1210
  %1260 = vmatprep.subr.mxu0 0.0
  %1261 = vmatpush2.msra.mxu0 0.0
  %1262 = vmatprep.subr.mxu0 0.0
  %1263 = vmatpush2.msra.mxu0 0.0
  %1264 = vmatprep.subr.mxu0 0.0
  %1265 = vmatpush2.msra.mxu0 0.0
  %1266 = vmatprep.subr.mxu0 0.0
  %1267 = vmatpush2.msra.mxu0 0.0
  %1268 = vmatprep.subr.mxu0 0.0
  %1269 = vmatpush2.msra.mxu0 0.0
  %1270 = vmatprep.subr.mxu0 0.0
  %1271 = vmatpush2.msra.mxu0 0.0
  %1272 = vmatprep.subr.mxu0 0.0
  %1273 = vmatpush2.msra.mxu0 0.0
  %1274 = vmatprep.subr.mxu0 0.0
  %1275 = vmatpush2.msra.mxu0 0.0
  %1276 = vmatprep.subr.mxu0 0.0
  %1277 = vmatpush2.msra.mxu0 0.0
  %1278 = vmatprep.subr.mxu0 0.0
  %1279 = vmatpush2.msra.mxu0 0.0
  %1280 = vmatprep.subr.mxu0 0.0
  %1281 = vmatpush2.msra.mxu0 0.0
  %1282 = vmatprep.subr.mxu0 0.0
  %1283 = vmatpush2.msra.mxu0 0.0
  %1284 = vmatprep.subr.mxu0 0.0
  %1285 = vmatpush2.msra.mxu0 0.0
  %1286 = vmatprep.subr.mxu0 0.0
  %1287 = vmatpush2.msra.mxu0 0.0
  %1288 = vmatprep.subr.mxu0 0.0
  %1289 = vmatpush2.msra.mxu0 0.0
  %1290 = vmatprep.subr.mxu0 0.0
  %1291 = vmatpush2.msra.mxu0 0.0
  %1292 = vmatprep.mubr.f32.mxu0 0.0
  %1293 = vmatmul.mubr.f32.gmra.mxu0 %v1226
  %v1294 = vpop.f32.mrf.mxu0
  %v1295 = vadd.f32 %v1223, %v1294
  %v1296 = vpop.f32.mrf.mxu0
  %v1297 = vadd.f32 %v1223, %v1296
  %1298 = vdwg.mxu0
  %v1301 = vcombine.low %v1295, %v1297
  %1303 = vst [vmem:[%s19] sm:$0xff] %v1301
  %v1304 = vld [vmem:[%s11] sm:$0xff]
  %v1305 = vld [vmem:[%s11 + $0x8] sm:$0xff]
  %v1306 = vld [vmem:[%s11 + $0x10] sm:$0xff]
  %v1307 = vld [vmem:[%s11 + $0x18] sm:$0xff]
  %v1308 = vld [vmem:[%s12] sm:$0xff]
  %v1309 = vld [vmem:[%s12 + $0x8] sm:$0xff]
  %v1310 = vld [vmem:[%s12 + $0x10] sm:$0xff]
  %v1311 = vld [vmem:[%s12 + $0x18] sm:$0xff]
  %1313 = vset.pattern.permute.xlu0 0
  %1314 = vperm.xlu0 %1313, %v1308
  %v1315 = vpop.permute.xlu0 %1314
  %1318 = vset.pattern.permute.xlu0 0
  %1319 = vperm.xlu0 %1318, %v1309
  %v1320 = vpop.permute.xlu0 %1319
  %1323 = vset.pattern.permute.xlu0 0
  %1324 = vperm.xlu0 %1323, %v1310
  %v1325 = vpop.permute.xlu0 %1324
  %1328 = vset.pattern.permute.xlu0 0
  %1329 = vperm.xlu0 %1328, %v1311
  %v1330 = vpop.permute.xlu0 %1329
  %v1333 = vcombine.high %v145, %v145
  %v1335 = vsel %vm410, %v1304, 0
  %v1338 = vsel %vm410, %v1305, 0
  %v1341 = vsel %vm410, %v1306, 0
  %v1344 = vsel %vm410, %v1307, 0
  %v1346 = vsel %vm423, %v145, 0
  %v1348 = vsel %vm423, %v1333, 0
  %1350 = vmatprep.subr.mxu0 0.0
  %1351 = vmatpush1.msra.mxu0 0.0
  %1352 = vmatprep.subr.mxu0 0.0
  %1353 = vmatpush1.msra.mxu0 0.0
  %1354 = vmatprep.subr.mxu0 0.0
  %1355 = vmatpush1.msra.mxu0 0.0
  %1356 = vmatprep.subr.mxu0 0.0
  %1357 = vmatpush1.msra.mxu0 0.0
  %1358 = vmatprep.subr.mxu0 0.0
  %1359 = vmatpush1.msra.mxu0 0.0
  %1360 = vmatprep.subr.mxu0 0.0
  %1361 = vmatpush1.msra.mxu0 0.0
  %1362 = vmatprep.subr.mxu0 0.0
  %1363 = vmatpush1.msra.mxu0 0.0
  %1364 = vmatprep.subr.mxu0 0.0
  %1365 = vmatpush1.msra.mxu0 0.0
  %1366 = vmatprep.subr.mxu0 0.0
  %1367 = vmatpush1.msra.mxu0 0.0
  %1368 = vmatprep.subr.mxu0 0.0
  %1369 = vmatpush1.msra.mxu0 0.0
  %1370 = vmatprep.subr.mxu0 0.0
  %1371 = vmatpush1.msra.mxu0 0.0
  %1372 = vmatprep.subr.mxu0 0.0
  %1373 = vmatpush1.msra.mxu0 0.0
  %1374 = vmatprep.subr.mxu0 0.0
  %1375 = vmatpush1.msra.mxu0 0.0
  %1376 = vmatprep.subr.mxu0 0.0
  %1377 = vmatpush1.msra.mxu0 0.0
  %1378 = vmatprep.subr.mxu0 0.0
  %1379 = vmatpush1.msra.mxu0 0.0
  %1380 = vmatprep.subr.mxu0 %v1348
  %1381 = vmatpush1.msra.mxu0 %v1346
  %1382 = vmatprep.subr.mxu0 0.0
  %1383 = vmatpush2.msra.mxu0 0.0
  %1384 = vmatprep.subr.mxu0 0.0
  %1385 = vmatpush2.msra.mxu0 0.0
  %1386 = vmatprep.subr.mxu0 0.0
  %1387 = vmatpush2.msra.mxu0 0.0
  %1388 = vmatprep.subr.mxu0 0.0
  %1389 = vmatpush2.msra.mxu0 0.0
  %1390 = vmatprep.subr.mxu0 0.0
  %1391 = vmatpush2.msra.mxu0 0.0
  %1392 = vmatprep.subr.mxu0 0.0
  %1393 = vmatpush2.msra.mxu0 0.0
  %1394 = vmatprep.subr.mxu0 0.0
  %1395 = vmatpush2.msra.mxu0 0.0
  %1396 = vmatprep.subr.mxu0 0.0
  %1397 = vmatpush2.msra.mxu0 0.0
  %1398 = vmatprep.subr.mxu0 0.0
  %1399 = vmatpush2.msra.mxu0 0.0
  %1400 = vmatprep.subr.mxu0 0.0
  %1401 = vmatpush2.msra.mxu0 0.0
  %1402 = vmatprep.subr.mxu0 0.0
  %1403 = vmatpush2.msra.mxu0 0.0
  %1404 = vmatprep.subr.mxu0 0.0
  %1405 = vmatpush2.msra.mxu0 0.0
  %1406 = vmatprep.subr.mxu0 0.0
  %1407 = vmatpush2.msra.mxu0 0.0
  %1408 = vmatprep.subr.mxu0 0.0
  %1409 = vmatpush2.msra.mxu0 0.0
  %1410 = vmatprep.subr.mxu0 0.0
  %1411 = vmatpush2.msra.mxu0 0.0
  %1412 = vmatprep.subr.mxu0 0.0
  %1413 = vmatpush2.msra.mxu0 0.0
  %1414 = vmatprep.mubr.f32.mxu0 0.0
  %1415 = vmatmul.mubr.f32.gmra.mxu0 %v1335
  %v1416 = vpop.f32.mrf.mxu0
  %v1417 = vadd.f32 %v1315, %v1416
  %v1418 = vpop.f32.mrf.mxu0
  %v1419 = vadd.f32 %v1315, %v1418
  %1420 = vmatprep.mubr.f32.mxu0 0.0
  %1421 = vmatmul.mubr.f32.gmra.mxu0 %v1338
  %v1422 = vpop.f32.mrf.mxu0
  %v1423 = vadd.f32 %v1320, %v1422
  %v1424 = vpop.f32.mrf.mxu0
  %v1425 = vadd.f32 %v1320, %v1424
  %1426 = vmatprep.mubr.f32.mxu0 0.0
  %1427 = vmatmul.mubr.f32.gmra.mxu0 %v1341
  %v1428 = vpop.f32.mrf.mxu0
  %v1429 = vadd.f32 %v1325, %v1428
  %v1430 = vpop.f32.mrf.mxu0
  %v1431 = vadd.f32 %v1325, %v1430
  %1432 = vmatprep.mubr.f32.mxu0 0.0
  %1433 = vmatmul.mubr.f32.gmra.mxu0 %v1344
  %v1434 = vpop.f32.mrf.mxu0
  %v1435 = vadd.f32 %v1330, %v1434
  %v1436 = vpop.f32.mrf.mxu0
  %v1437 = vadd.f32 %v1330, %v1436
  %1438 = vdwg.mxu0
  %s1439 = scalar_lea.vmem %s6, 32
  %v1440 = vld [vmem:[%s1439] sm:$0xff]
  %v1441 = vld [vmem:[%s1439 + $0x8] sm:$0xff]
  %v1442 = vld [vmem:[%s1439 + $0x10] sm:$0xff]
  %v1443 = vld [vmem:[%s1439 + $0x18] sm:$0xff]
  %1445 = vset.pattern.permute.xlu0 0
  %1446 = vperm.xlu0 %1445, %v1440
  %v1447 = vpop.permute.xlu0 %1446
  %1450 = vset.pattern.permute.xlu0 0
  %1451 = vperm.xlu0 %1450, %v1441
  %v1452 = vpop.permute.xlu0 %1451
  %1455 = vset.pattern.permute.xlu0 0
  %1456 = vperm.xlu0 %1455, %v1442
  %v1457 = vpop.permute.xlu0 %1456
  %1460 = vset.pattern.permute.xlu0 0
  %1461 = vperm.xlu0 %1460, %v1443
  %v1462 = vpop.permute.xlu0 %1461
  %v1464 = vadd.f32 %v1417, %v1447
  %v1465 = vadd.f32 %v1419, %v1447
  %v1466 = vadd.f32 %v1423, %v1452
  %v1467 = vadd.f32 %v1425, %v1452
  %v1468 = vadd.f32 %v1429, %v1457
  %v1469 = vadd.f32 %v1431, %v1457
  %v1470 = vadd.f32 %v1435, %v1462
  %v1471 = vadd.f32 %v1437, %v1462
  %v1472 = vxor.u32 %v1464, 2147483648
  %v1473 = vxor.u32 %v1465, 2147483648
  %v1474 = vxor.u32 %v1466, 2147483648
  %v1475 = vxor.u32 %v1467, 2147483648
  %v1476 = vxor.u32 %v1468, 2147483648
  %v1477 = vxor.u32 %v1469, 2147483648
  %v1478 = vxor.u32 %v1470, 2147483648
  %v1479 = vxor.u32 %v1471, 2147483648
  %v1480 = vmul.f32 %v1472, 1.442695
  %v1481 = vpow.pop %v1480
  %v1482 = vmul.f32 %v1473, 1.442695
  %v1483 = vpow.pop %v1482
  %v1484 = vmul.f32 %v1474, 1.442695
  %v1485 = vpow.pop %v1484
  %v1486 = vmul.f32 %v1475, 1.442695
  %v1487 = vpow.pop %v1486
  %v1488 = vmul.f32 %v1476, 1.442695
  %v1489 = vpow.pop %v1488
  %v1490 = vmul.f32 %v1477, 1.442695
  %v1491 = vpow.pop %v1490
  %v1492 = vmul.f32 %v1478, 1.442695
  %v1493 = vpow.pop %v1492
  %v1494 = vmul.f32 %v1479, 1.442695
  %v1495 = vpow.pop %v1494
  %v1496 = vadd.f32 %v1481, 1.0
  %v1497 = vadd.f32 %v1483, 1.0
  %v1498 = vadd.f32 %v1485, 1.0
  %v1499 = vadd.f32 %v1487, 1.0
  %v1500 = vadd.f32 %v1489, 1.0
  %v1501 = vadd.f32 %v1491, 1.0
  %v1502 = vadd.f32 %v1493, 1.0
  %v1503 = vadd.f32 %v1495, 1.0
  %v1504 = vrcp.pop %v1496
  %v1505 = vmul.f32 1.0, %v1504
  %v1506 = vrcp.pop %v1497
  %v1507 = vmul.f32 1.0, %v1506
  %v1508 = vrcp.pop %v1498
  %v1509 = vmul.f32 1.0, %v1508
  %v1510 = vrcp.pop %v1499
  %v1511 = vmul.f32 1.0, %v1510
  %v1512 = vrcp.pop %v1500
  %v1513 = vmul.f32 1.0, %v1512
  %v1514 = vrcp.pop %v1501
  %v1515 = vmul.f32 1.0, %v1514
  %v1516 = vrcp.pop %v1502
  %v1517 = vmul.f32 1.0, %v1516
  %v1518 = vrcp.pop %v1503
  %v1519 = vmul.f32 1.0, %v1518
  %v1520 = vmul.f32 %v1464, %v1505
  %v1521 = vmul.f32 %v1465, %v1507
  %v1522 = vmul.f32 %v1466, %v1509
  %v1523 = vmul.f32 %v1467, %v1511
  %v1524 = vmul.f32 %v1468, %v1513
  %v1525 = vmul.f32 %v1469, %v1515
  %v1526 = vmul.f32 %v1470, %v1517
  %v1527 = vmul.f32 %v1471, %v1519
  %v1528 = vld [vmem:[%s13] sm:$0xff]
  %v1529 = vld [vmem:[%s13 + $0x8] sm:$0xff]
  %v1530 = vld [vmem:[%s13 + $0x10] sm:$0xff]
  %v1531 = vld [vmem:[%s13 + $0x18] sm:$0xff]
  %v1533 = vsel %vm150, %v1528, 0
  %v1536 = vsel %vm150, %v1529, 0
  %v1539 = vsel %vm150, %v1530, 0
  %v1542 = vsel %vm150, %v1531, 0
  %1544 = vmatprep.subr.mxu0 0.0
  %1545 = vmatpush1.msra.mxu0 0.0
  %1546 = vmatprep.subr.mxu0 0.0
  %1547 = vmatpush1.msra.mxu0 0.0
  %1548 = vmatprep.subr.mxu0 0.0
  %1549 = vmatpush1.msra.mxu0 0.0
  %1550 = vmatprep.subr.mxu0 0.0
  %1551 = vmatpush1.msra.mxu0 0.0
  %1552 = vmatprep.subr.mxu0 0.0
  %1553 = vmatpush1.msra.mxu0 0.0
  %1554 = vmatprep.subr.mxu0 0.0
  %1555 = vmatpush1.msra.mxu0 0.0
  %1556 = vmatprep.subr.mxu0 0.0
  %1557 = vmatpush1.msra.mxu0 0.0
  %1558 = vmatprep.subr.mxu0 0.0
  %1559 = vmatpush1.msra.mxu0 0.0
  %1560 = vmatprep.subr.mxu0 0.0
  %1561 = vmatpush1.msra.mxu0 0.0
  %1562 = vmatprep.subr.mxu0 0.0
  %1563 = vmatpush1.msra.mxu0 0.0
  %1564 = vmatprep.subr.mxu0 0.0
  %1565 = vmatpush1.msra.mxu0 0.0
  %1566 = vmatprep.subr.mxu0 0.0
  %1567 = vmatpush1.msra.mxu0 0.0
  %1568 = vmatprep.subr.mxu0 %v1527
  %1569 = vmatpush1.msra.mxu0 %v1526
  %1570 = vmatprep.subr.mxu0 %v1525
  %1571 = vmatpush1.msra.mxu0 %v1524
  %1572 = vmatprep.subr.mxu0 %v1523
  %1573 = vmatpush1.msra.mxu0 %v1522
  %1574 = vmatprep.subr.mxu0 %v1521
  %1575 = vmatpush1.msra.mxu0 %v1520
  %1576 = vmatprep.subr.mxu0 0.0
  %1577 = vmatpush2.msra.mxu0 0.0
  %1578 = vmatprep.subr.mxu0 0.0
  %1579 = vmatpush2.msra.mxu0 0.0
  %1580 = vmatprep.subr.mxu0 0.0
  %1581 = vmatpush2.msra.mxu0 0.0
  %1582 = vmatprep.subr.mxu0 0.0
  %1583 = vmatpush2.msra.mxu0 0.0
  %1584 = vmatprep.subr.mxu0 0.0
  %1585 = vmatpush2.msra.mxu0 0.0
  %1586 = vmatprep.subr.mxu0 0.0
  %1587 = vmatpush2.msra.mxu0 0.0
  %1588 = vmatprep.subr.mxu0 0.0
  %1589 = vmatpush2.msra.mxu0 0.0
  %1590 = vmatprep.subr.mxu0 0.0
  %1591 = vmatpush2.msra.mxu0 0.0
  %1592 = vmatprep.subr.mxu0 0.0
  %1593 = vmatpush2.msra.mxu0 0.0
  %1594 = vmatprep.subr.mxu0 0.0
  %1595 = vmatpush2.msra.mxu0 0.0
  %1596 = vmatprep.subr.mxu0 0.0
  %1597 = vmatpush2.msra.mxu0 0.0
  %1598 = vmatprep.subr.mxu0 0.0
  %1599 = vmatpush2.msra.mxu0 0.0
  %1600 = vmatprep.subr.mxu0 0.0
  %1601 = vmatpush2.msra.mxu0 0.0
  %1602 = vmatprep.subr.mxu0 0.0
  %1603 = vmatpush2.msra.mxu0 0.0
  %1604 = vmatprep.subr.mxu0 0.0
  %1605 = vmatpush2.msra.mxu0 0.0
  %1606 = vmatprep.subr.mxu0 0.0
  %1607 = vmatpush2.msra.mxu0 0.0
  %1608 = vmatprep.mubr.f32.mxu0 0.0
  %1609 = vmatmul.mubr.f32.gmra.mxu0 %v1533
  %v1610 = vpop.f32.mrf.mxu0
  %v1611 = vadd.f32 0.0, %v1610
  %v1612 = vpop.f32.mrf.mxu0
  %v1613 = vadd.f32 0.0, %v1612
  %1614 = vmatprep.mubr.f32.mxu0 0.0
  %1615 = vmatmul.mubr.f32.gmra.mxu0 %v1536
  %v1616 = vpop.f32.mrf.mxu0
  %v1617 = vadd.f32 0.0, %v1616
  %v1618 = vpop.f32.mrf.mxu0
  %v1619 = vadd.f32 0.0, %v1618
  %1620 = vmatprep.mubr.f32.mxu0 0.0
  %1621 = vmatmul.mubr.f32.gmra.mxu0 %v1539
  %v1622 = vpop.f32.mrf.mxu0
  %v1623 = vadd.f32 0.0, %v1622
  %v1624 = vpop.f32.mrf.mxu0
  %v1625 = vadd.f32 0.0, %v1624
  %1626 = vmatprep.mubr.f32.mxu0 0.0
  %1627 = vmatmul.mubr.f32.gmra.mxu0 %v1542
  %v1628 = vpop.f32.mrf.mxu0
  %v1629 = vadd.f32 0.0, %v1628
  %v1630 = vpop.f32.mrf.mxu0
  %v1631 = vadd.f32 0.0, %v1630
  %1632 = vdwg.mxu0
  %v1633 = vld [vmem:[%s14] sm:$0xff]
  %v1634 = vld [vmem:[%s14 + $0x8] sm:$0xff]
  %v1635 = vld [vmem:[%s14 + $0x10] sm:$0xff]
  %v1636 = vld [vmem:[%s14 + $0x18] sm:$0xff]
  %v1638 = vsel %vm150, %v377, 0
  %1640 = vmatprep.subr.mxu0 0.0
  %1641 = vmatpush1.msra.mxu0 0.0
  %1642 = vmatprep.subr.mxu0 0.0
  %1643 = vmatpush1.msra.mxu0 0.0
  %1644 = vmatprep.subr.mxu0 0.0
  %1645 = vmatpush1.msra.mxu0 0.0
  %1646 = vmatprep.subr.mxu0 0.0
  %1647 = vmatpush1.msra.mxu0 0.0
  %1648 = vmatprep.subr.mxu0 0.0
  %1649 = vmatpush1.msra.mxu0 0.0
  %1650 = vmatprep.subr.mxu0 0.0
  %1651 = vmatpush1.msra.mxu0 0.0
  %1652 = vmatprep.subr.mxu0 0.0
  %1653 = vmatpush1.msra.mxu0 0.0
  %1654 = vmatprep.subr.mxu0 0.0
  %1655 = vmatpush1.msra.mxu0 0.0
  %1656 = vmatprep.subr.mxu0 0.0
  %1657 = vmatpush1.msra.mxu0 0.0
  %1658 = vmatprep.subr.mxu0 0.0
  %1659 = vmatpush1.msra.mxu0 0.0
  %1660 = vmatprep.subr.mxu0 0.0
  %1661 = vmatpush1.msra.mxu0 0.0
  %1662 = vmatprep.subr.mxu0 0.0
  %1663 = vmatpush1.msra.mxu0 0.0
  %1664 = vmatprep.subr.mxu0 0.0
  %1665 = vmatpush1.msra.mxu0 %v1636
  %1666 = vmatprep.subr.mxu0 0.0
  %1667 = vmatpush1.msra.mxu0 %v1635
  %1668 = vmatprep.subr.mxu0 0.0
  %1669 = vmatpush1.msra.mxu0 %v1634
  %1670 = vmatprep.subr.mxu0 0.0
  %1671 = vmatpush1.msra.mxu0 %v1633
  %1672 = vmatprep.subr.mxu0 0.0
  %1673 = vmatpush2.msra.mxu0 0.0
  %1674 = vmatprep.subr.mxu0 0.0
  %1675 = vmatpush2.msra.mxu0 0.0
  %1676 = vmatprep.subr.mxu0 0.0
  %1677 = vmatpush2.msra.mxu0 0.0
  %1678 = vmatprep.subr.mxu0 0.0
  %1679 = vmatpush2.msra.mxu0 0.0
  %1680 = vmatprep.subr.mxu0 0.0
  %1681 = vmatpush2.msra.mxu0 0.0
  %1682 = vmatprep.subr.mxu0 0.0
  %1683 = vmatpush2.msra.mxu0 0.0
  %1684 = vmatprep.subr.mxu0 0.0
  %1685 = vmatpush2.msra.mxu0 0.0
  %1686 = vmatprep.subr.mxu0 0.0
  %1687 = vmatpush2.msra.mxu0 0.0
  %1688 = vmatprep.subr.mxu0 0.0
  %1689 = vmatpush2.msra.mxu0 0.0
  %1690 = vmatprep.subr.mxu0 0.0
  %1691 = vmatpush2.msra.mxu0 0.0
  %1692 = vmatprep.subr.mxu0 0.0
  %1693 = vmatpush2.msra.mxu0 0.0
  %1694 = vmatprep.subr.mxu0 0.0
  %1695 = vmatpush2.msra.mxu0 0.0
  %1696 = vmatprep.subr.mxu0 0.0
  %1697 = vmatpush2.msra.mxu0 0.0
  %1698 = vmatprep.subr.mxu0 0.0
  %1699 = vmatpush2.msra.mxu0 0.0
  %1700 = vmatprep.subr.mxu0 0.0
  %1701 = vmatpush2.msra.mxu0 0.0
  %1702 = vmatprep.subr.mxu0 0.0
  %1703 = vmatpush2.msra.mxu0 0.0
  %1704 = vmatprep.mubr.f32.mxu0 0.0
  %1705 = vmatmul.mubr.f32.gmra.mxu0 %v1638
  %v1706 = vpop.f32.mrf.mxu0
  %v1707 = vadd.f32 0.0, %v1706
  %v1708 = vpop.f32.mrf.mxu0
  %1709 = vdwg.mxu0
  %v1710 = vld [vmem:[%s15] sm:$0xff]
  %v1711 = vld [vmem:[%s15 + $0x8] sm:$0xff]
  %v1712 = vld [vmem:[%s15 + $0x10] sm:$0xff]
  %v1713 = vld [vmem:[%s15 + $0x18] sm:$0xff]
  %1714 = vmatprep.subr.mxu0 0.0
  %1715 = vmatpush1.msra.mxu0 0.0
  %1716 = vmatprep.subr.mxu0 0.0
  %1717 = vmatpush1.msra.mxu0 0.0
  %1718 = vmatprep.subr.mxu0 0.0
  %1719 = vmatpush1.msra.mxu0 0.0
  %1720 = vmatprep.subr.mxu0 0.0
  %1721 = vmatpush1.msra.mxu0 0.0
  %1722 = vmatprep.subr.mxu0 0.0
  %1723 = vmatpush1.msra.mxu0 0.0
  %1724 = vmatprep.subr.mxu0 0.0
  %1725 = vmatpush1.msra.mxu0 0.0
  %1726 = vmatprep.subr.mxu0 0.0
  %1727 = vmatpush1.msra.mxu0 0.0
  %1728 = vmatprep.subr.mxu0 0.0
  %1729 = vmatpush1.msra.mxu0 0.0
  %1730 = vmatprep.subr.mxu0 0.0
  %1731 = vmatpush1.msra.mxu0 0.0
  %1732 = vmatprep.subr.mxu0 0.0
  %1733 = vmatpush1.msra.mxu0 0.0
  %1734 = vmatprep.subr.mxu0 0.0
  %1735 = vmatpush1.msra.mxu0 0.0
  %1736 = vmatprep.subr.mxu0 0.0
  %1737 = vmatpush1.msra.mxu0 0.0
  %1738 = vmatprep.subr.mxu0 0.0
  %1739 = vmatpush1.msra.mxu0 %v1713
  %1740 = vmatprep.subr.mxu0 0.0
  %1741 = vmatpush1.msra.mxu0 %v1712
  %1742 = vmatprep.subr.mxu0 0.0
  %1743 = vmatpush1.msra.mxu0 %v1711
  %1744 = vmatprep.subr.mxu0 0.0
  %1745 = vmatpush1.msra.mxu0 %v1710
  %1746 = vmatprep.subr.mxu0 0.0
  %1747 = vmatpush2.msra.mxu0 0.0
  %1748 = vmatprep.subr.mxu0 0.0
  %1749 = vmatpush2.msra.mxu0 0.0
  %1750 = vmatprep.subr.mxu0 0.0
  %1751 = vmatpush2.msra.mxu0 0.0
  %1752 = vmatprep.subr.mxu0 0.0
  %1753 = vmatpush2.msra.mxu0 0.0
  %1754 = vmatprep.subr.mxu0 0.0
  %1755 = vmatpush2.msra.mxu0 0.0
  %1756 = vmatprep.subr.mxu0 0.0
  %1757 = vmatpush2.msra.mxu0 0.0
  %1758 = vmatprep.subr.mxu0 0.0
  %1759 = vmatpush2.msra.mxu0 0.0
  %1760 = vmatprep.subr.mxu0 0.0
  %1761 = vmatpush2.msra.mxu0 0.0
  %1762 = vmatprep.subr.mxu0 0.0
  %1763 = vmatpush2.msra.mxu0 0.0
  %1764 = vmatprep.subr.mxu0 0.0
  %1765 = vmatpush2.msra.mxu0 0.0
  %1766 = vmatprep.subr.mxu0 0.0
  %1767 = vmatpush2.msra.mxu0 0.0
  %1768 = vmatprep.subr.mxu0 0.0
  %1769 = vmatpush2.msra.mxu0 0.0
  %1770 = vmatprep.subr.mxu0 0.0
  %1771 = vmatpush2.msra.mxu0 0.0
  %1772 = vmatprep.subr.mxu0 0.0
  %1773 = vmatpush2.msra.mxu0 0.0
  %1774 = vmatprep.subr.mxu0 0.0
  %1775 = vmatpush2.msra.mxu0 0.0
  %1776 = vmatprep.subr.mxu0 0.0
  %1777 = vmatpush2.msra.mxu0 0.0
  %1778 = vmatprep.mubr.f32.mxu0 0.0
  %1779 = vmatmul.mubr.f32.gmra.mxu0 %v1638
  %v1780 = vpop.f32.mrf.mxu0
  %v1781 = vadd.f32 0.0, %v1780
  %v1782 = vpop.f32.mrf.mxu0
  %1783 = vdwg.mxu0
  %v1785 = vsel %vm150, %v1707, 0
  %1787 = vmatprep.subr.mxu0 0.0
  %1788 = vmatpush1.msra.mxu0 0.0
  %1789 = vmatprep.subr.mxu0 0.0
  %1790 = vmatpush1.msra.mxu0 0.0
  %1791 = vmatprep.subr.mxu0 0.0
  %1792 = vmatpush1.msra.mxu0 0.0
  %1793 = vmatprep.subr.mxu0 0.0
  %1794 = vmatpush1.msra.mxu0 0.0
  %1795 = vmatprep.subr.mxu0 0.0
  %1796 = vmatpush1.msra.mxu0 0.0
  %1797 = vmatprep.subr.mxu0 0.0
  %1798 = vmatpush1.msra.mxu0 0.0
  %1799 = vmatprep.subr.mxu0 0.0
  %1800 = vmatpush1.msra.mxu0 0.0
  %1801 = vmatprep.subr.mxu0 0.0
  %1802 = vmatpush1.msra.mxu0 0.0
  %1803 = vmatprep.subr.mxu0 0.0
  %1804 = vmatpush1.msra.mxu0 0.0
  %1805 = vmatprep.subr.mxu0 0.0
  %1806 = vmatpush1.msra.mxu0 0.0
  %1807 = vmatprep.subr.mxu0 0.0
  %1808 = vmatpush1.msra.mxu0 0.0
  %1809 = vmatprep.subr.mxu0 0.0
  %1810 = vmatpush1.msra.mxu0 0.0
  %1811 = vmatprep.subr.mxu0 %v1631
  %1812 = vmatpush1.msra.mxu0 %v1629
  %1813 = vmatprep.subr.mxu0 %v1625
  %1814 = vmatpush1.msra.mxu0 %v1623
  %1815 = vmatprep.subr.mxu0 %v1619
  %1816 = vmatpush1.msra.mxu0 %v1617
  %1817 = vmatprep.subr.mxu0 %v1613
  %1818 = vmatpush1.msra.mxu0 %v1611
  %1819 = vmatprep.subr.mxu0 0.0
  %1820 = vmatpush2.msra.mxu0 0.0
  %1821 = vmatprep.subr.mxu0 0.0
  %1822 = vmatpush2.msra.mxu0 0.0
  %1823 = vmatprep.subr.mxu0 0.0
  %1824 = vmatpush2.msra.mxu0 0.0
  %1825 = vmatprep.subr.mxu0 0.0
  %1826 = vmatpush2.msra.mxu0 0.0
  %1827 = vmatprep.subr.mxu0 0.0
  %1828 = vmatpush2.msra.mxu0 0.0
  %1829 = vmatprep.subr.mxu0 0.0
  %1830 = vmatpush2.msra.mxu0 0.0
  %1831 = vmatprep.subr.mxu0 0.0
  %1832 = vmatpush2.msra.mxu0 0.0
  %1833 = vmatprep.subr.mxu0 0.0
  %1834 = vmatpush2.msra.mxu0 0.0
  %1835 = vmatprep.subr.mxu0 0.0
  %1836 = vmatpush2.msra.mxu0 0.0
  %1837 = vmatprep.subr.mxu0 0.0
  %1838 = vmatpush2.msra.mxu0 0.0
  %1839 = vmatprep.subr.mxu0 0.0
  %1840 = vmatpush2.msra.mxu0 0.0
  %1841 = vmatprep.subr.mxu0 0.0
  %1842 = vmatpush2.msra.mxu0 0.0
  %1843 = vmatprep.subr.mxu0 0.0
  %1844 = vmatpush2.msra.mxu0 0.0
  %1845 = vmatprep.subr.mxu0 0.0
  %1846 = vmatpush2.msra.mxu0 0.0
  %1847 = vmatprep.subr.mxu0 0.0
  %1848 = vmatpush2.msra.mxu0 0.0
  %1849 = vmatprep.subr.mxu0 0.0
  %1850 = vmatpush2.msra.mxu0 0.0
  %1851 = vmatprep.mubr.f32.mxu0 0.0
  %1852 = vmatmul.mubr.f32.gmra.mxu0 %v1785
  %v1853 = vpop.f32.mrf.mxu0
  %v1854 = vadd.f32 0.0, %v1853
  %v1855 = vpop.f32.mrf.mxu0
  %v1856 = vadd.f32 0.0, %v1855
  %1857 = vdwg.mxu0
  %v1858 = vmul.f32 %v1854, 0.17677669
  %v1859 = vmul.f32 %v1856, 0.17677669
  %v1860 = vrot.slane %v1858, 4
  %v1861 = vmax.f32 %v1858, %v1860
  %v1862 = vrot.slane %v1861, 2
  %v1863 = vmax.f32 %v1861, %v1862
  %v1864 = vrot.slane %v1863, 1
  %v1865 = vmax.f32 %v1863, %v1864
  %v1866 = vrot.slane %v1859, 4
  %v1867 = vmax.f32 %v1859, %v1866
  %v1868 = vrot.slane %v1867, 2
  %v1869 = vmax.f32 %v1867, %v1868
  %v1870 = vrot.slane %v1869, 1
  %v1871 = vmax.f32 %v1869, %v1870
  %v1872 = vsub.f32 %v1858, %v1865
  %v1873 = vsub.f32 %v1859, %v1871
  %v1874 = vmul.f32 %v1872, 1.442695
  %v1875 = vpow.pop %v1874
  %v1876 = vmul.f32 %v1873, 1.442695
  %v1877 = vpow.pop %v1876
  %v1878 = vrot.slane %v1875, 4
  %v1879 = vadd.f32 %v1875, %v1878
  %v1880 = vrot.slane %v1879, 2
  %v1881 = vadd.f32 %v1879, %v1880
  %v1882 = vrot.slane %v1881, 1
  %v1883 = vadd.f32 %v1881, %v1882
  %v1884 = vrot.slane %v1877, 4
  %v1885 = vadd.f32 %v1877, %v1884
  %v1886 = vrot.slane %v1885, 2
  %v1887 = vadd.f32 %v1885, %v1886
  %v1888 = vrot.slane %v1887, 1
  %v1889 = vadd.f32 %v1887, %v1888
  %v1890 = vrcp.pop %v1883
  %v1891 = vrcp.pop %v1889
  %v1892 = vmul.f32 %v1875, %v1890
  %v1893 = vmul.f32 %v1877, %v1891
  %1894 = vxpose.xlu0.b32.start [1/16] %v1781, 128
  %1895 = vxpose.xlu0.b32.cont [2/16] 0.0, 128
  %1896 = vxpose.xlu0.b32.cont [3/16] 0.0, 128
  %1897 = vxpose.xlu0.b32.cont [4/16] 0.0, 128
  %1898 = vxpose.xlu0.b32.cont [5/16] 0.0, 128
  %1899 = vxpose.xlu0.b32.cont [6/16] 0.0, 128
  %1900 = vxpose.xlu0.b32.cont [7/16] 0.0, 128
  %1901 = vxpose.xlu0.b32.cont [8/16] 0.0, 128
  %1902 = vxpose.xlu0.b32.cont [9/16] 0.0, 128
  %1903 = vxpose.xlu0.b32.cont [10/16] 0.0, 128
  %1904 = vxpose.xlu0.b32.cont [11/16] 0.0, 128
  %1905 = vxpose.xlu0.b32.cont [12/16] 0.0, 128
  %1906 = vxpose.xlu0.b32.cont [13/16] 0.0, 128
  %1907 = vxpose.xlu0.b32.cont [14/16] 0.0, 128
  %1908 = vxpose.xlu0.b32.cont [15/16] 0.0, 128
  %1909 = vxpose.xlu0.b32.end [16/16] 0.0, 128
  %v1910 = vpop.trf.xlu0
  %v1911 = vpop.trf.xlu0
  %v1912 = vpop.trf.xlu0
  %v1913 = vpop.trf.xlu0
  %v1914 = vpop.trf.xlu0
  %v1915 = vpop.trf.xlu0
  %v1916 = vpop.trf.xlu0
  %v1917 = vpop.trf.xlu0
  %v1918 = vpop.trf.xlu0
  %v1919 = vpop.trf.xlu0
  %v1920 = vpop.trf.xlu0
  %v1921 = vpop.trf.xlu0
  %v1922 = vpop.trf.xlu0
  %v1923 = vpop.trf.xlu0
  %v1924 = vpop.trf.xlu0
  %v1925 = vpop.trf.xlu0
  %v1927 = vsel %vm1003, %v1910, 0
  %v1930 = vsel %vm1003, %v1911, 0
  %v1933 = vsel %vm1003, %v1912, 0
  %v1936 = vsel %vm1003, %v1913, 0
  %1938 = vmatprep.subr.mxu0 0.0
  %1939 = vmatpush1.msra.mxu0 0.0
  %1940 = vmatprep.subr.mxu0 0.0
  %1941 = vmatpush1.msra.mxu0 0.0
  %1942 = vmatprep.subr.mxu0 0.0
  %1943 = vmatpush1.msra.mxu0 0.0
  %1944 = vmatprep.subr.mxu0 0.0
  %1945 = vmatpush1.msra.mxu0 0.0
  %1946 = vmatprep.subr.mxu0 0.0
  %1947 = vmatpush1.msra.mxu0 0.0
  %1948 = vmatprep.subr.mxu0 0.0
  %1949 = vmatpush1.msra.mxu0 0.0
  %1950 = vmatprep.subr.mxu0 0.0
  %1951 = vmatpush1.msra.mxu0 0.0
  %1952 = vmatprep.subr.mxu0 0.0
  %1953 = vmatpush1.msra.mxu0 0.0
  %1954 = vmatprep.subr.mxu0 0.0
  %1955 = vmatpush1.msra.mxu0 0.0
  %1956 = vmatprep.subr.mxu0 0.0
  %1957 = vmatpush1.msra.mxu0 0.0
  %1958 = vmatprep.subr.mxu0 0.0
  %1959 = vmatpush1.msra.mxu0 0.0
  %1960 = vmatprep.subr.mxu0 0.0
  %1961 = vmatpush1.msra.mxu0 0.0
  %1962 = vmatprep.subr.mxu0 0.0
  %1963 = vmatpush1.msra.mxu0 0.0
  %1964 = vmatprep.subr.mxu0 0.0
  %1965 = vmatpush1.msra.mxu0 0.0
  %1966 = vmatprep.subr.mxu0 0.0
  %1967 = vmatpush1.msra.mxu0 0.0
  %1968 = vmatprep.subr.mxu0 %v1893
  %1969 = vmatpush1.msra.mxu0 %v1892
  %1970 = vmatprep.subr.mxu0 0.0
  %1971 = vmatpush2.msra.mxu0 0.0
  %1972 = vmatprep.subr.mxu0 0.0
  %1973 = vmatpush2.msra.mxu0 0.0
  %1974 = vmatprep.subr.mxu0 0.0
  %1975 = vmatpush2.msra.mxu0 0.0
  %1976 = vmatprep.subr.mxu0 0.0
  %1977 = vmatpush2.msra.mxu0 0.0
  %1978 = vmatprep.subr.mxu0 0.0
  %1979 = vmatpush2.msra.mxu0 0.0
  %1980 = vmatprep.subr.mxu0 0.0
  %1981 = vmatpush2.msra.mxu0 0.0
  %1982 = vmatprep.subr.mxu0 0.0
  %1983 = vmatpush2.msra.mxu0 0.0
  %1984 = vmatprep.subr.mxu0 0.0
  %1985 = vmatpush2.msra.mxu0 0.0
  %1986 = vmatprep.subr.mxu0 0.0
  %1987 = vmatpush2.msra.mxu0 0.0
  %1988 = vmatprep.subr.mxu0 0.0
  %1989 = vmatpush2.msra.mxu0 0.0
  %1990 = vmatprep.subr.mxu0 0.0
  %1991 = vmatpush2.msra.mxu0 0.0
  %1992 = vmatprep.subr.mxu0 0.0
  %1993 = vmatpush2.msra.mxu0 0.0
  %1994 = vmatprep.subr.mxu0 0.0
  %1995 = vmatpush2.msra.mxu0 0.0
  %1996 = vmatprep.subr.mxu0 0.0
  %1997 = vmatpush2.msra.mxu0 0.0
  %1998 = vmatprep.subr.mxu0 0.0
  %1999 = vmatpush2.msra.mxu0 0.0
  %2000 = vmatprep.subr.mxu0 0.0
  %2001 = vmatpush2.msra.mxu0 0.0
  %2002 = vmatprep.mubr.f32.mxu0 0.0
  %2003 = vmatmul.mubr.f32.gmra.mxu0 %v1927
  %v2004 = vpop.f32.mrf.mxu0
  %v2005 = vadd.f32 0.0, %v2004
  %v2006 = vpop.f32.mrf.mxu0
  %v2007 = vadd.f32 0.0, %v2006
  %2008 = vmatprep.mubr.f32.mxu0 0.0
  %2009 = vmatmul.mubr.f32.gmra.mxu0 %v1930
  %v2010 = vpop.f32.mrf.mxu0
  %v2011 = vadd.f32 0.0, %v2010
  %v2012 = vpop.f32.mrf.mxu0
  %v2013 = vadd.f32 0.0, %v2012
  %2014 = vmatprep.mubr.f32.mxu0 0.0
  %2015 = vmatmul.mubr.f32.gmra.mxu0 %v1933
  %v2016 = vpop.f32.mrf.mxu0
  %v2017 = vadd.f32 0.0, %v2016
  %v2018 = vpop.f32.mrf.mxu0
  %v2019 = vadd.f32 0.0, %v2018
  %2020 = vmatprep.mubr.f32.mxu0 0.0
  %2021 = vmatmul.mubr.f32.gmra.mxu0 %v1936
  %v2022 = vpop.f32.mrf.mxu0
  %v2023 = vadd.f32 0.0, %v2022
  %v2024 = vpop.f32.mrf.mxu0
  %v2025 = vadd.f32 0.0, %v2024
  %2026 = vdwg.mxu0
  %v2027 = vld [vmem:[%s16] sm:$0xff]
  %v2028 = vld [vmem:[%s16 + $0x8] sm:$0xff]
  %v2029 = vld [vmem:[%s16 + $0x10] sm:$0xff]
  %v2030 = vld [vmem:[%s16 + $0x18] sm:$0xff]
  %v2032 = vsel %vm150, %v2027, 0
  %v2035 = vsel %vm150, %v2028, 0
  %v2038 = vsel %vm150, %v2029, 0
  %v2041 = vsel %vm150, %v2030, 0
  %2043 = vmatprep.subr.mxu0 0.0
  %2044 = vmatpush1.msra.mxu0 0.0
  %2045 = vmatprep.subr.mxu0 0.0
  %2046 = vmatpush1.msra.mxu0 0.0
  %2047 = vmatprep.subr.mxu0 0.0
  %2048 = vmatpush1.msra.mxu0 0.0
  %2049 = vmatprep.subr.mxu0 0.0
  %2050 = vmatpush1.msra.mxu0 0.0
  %2051 = vmatprep.subr.mxu0 0.0
  %2052 = vmatpush1.msra.mxu0 0.0
  %2053 = vmatprep.subr.mxu0 0.0
  %2054 = vmatpush1.msra.mxu0 0.0
  %2055 = vmatprep.subr.mxu0 0.0
  %2056 = vmatpush1.msra.mxu0 0.0
  %2057 = vmatprep.subr.mxu0 0.0
  %2058 = vmatpush1.msra.mxu0 0.0
  %2059 = vmatprep.subr.mxu0 0.0
  %2060 = vmatpush1.msra.mxu0 0.0
  %2061 = vmatprep.subr.mxu0 0.0
  %2062 = vmatpush1.msra.mxu0 0.0
  %2063 = vmatprep.subr.mxu0 0.0
  %2064 = vmatpush1.msra.mxu0 0.0
  %2065 = vmatprep.subr.mxu0 0.0
  %2066 = vmatpush1.msra.mxu0 0.0
  %2067 = vmatprep.subr.mxu0 %v2025
  %2068 = vmatpush1.msra.mxu0 %v2023
  %2069 = vmatprep.subr.mxu0 %v2019
  %2070 = vmatpush1.msra.mxu0 %v2017
  %2071 = vmatprep.subr.mxu0 %v2013
  %2072 = vmatpush1.msra.mxu0 %v2011
  %2073 = vmatprep.subr.mxu0 %v2007
  %2074 = vmatpush1.msra.mxu0 %v2005
  %2075 = vmatprep.subr.mxu0 0.0
  %2076 = vmatpush2.msra.mxu0 0.0
  %2077 = vmatprep.subr.mxu0 0.0
  %2078 = vmatpush2.msra.mxu0 0.0
  %2079 = vmatprep.subr.mxu0 0.0
  %2080 = vmatpush2.msra.mxu0 0.0
  %2081 = vmatprep.subr.mxu0 0.0
  %2082 = vmatpush2.msra.mxu0 0.0
  %2083 = vmatprep.subr.mxu0 0.0
  %2084 = vmatpush2.msra.mxu0 0.0
  %2085 = vmatprep.subr.mxu0 0.0
  %2086 = vmatpush2.msra.mxu0 0.0
  %2087 = vmatprep.subr.mxu0 0.0
  %2088 = vmatpush2.msra.mxu0 0.0
  %2089 = vmatprep.subr.mxu0 0.0
  %2090 = vmatpush2.msra.mxu0 0.0
  %2091 = vmatprep.subr.mxu0 0.0
  %2092 = vmatpush2.msra.mxu0 0.0
  %2093 = vmatprep.subr.mxu0 0.0
  %2094 = vmatpush2.msra.mxu0 0.0
  %2095 = vmatprep.subr.mxu0 0.0
  %2096 = vmatpush2.msra.mxu0 0.0
  %2097 = vmatprep.subr.mxu0 0.0
  %2098 = vmatpush2.msra.mxu0 0.0
  %2099 = vmatprep.subr.mxu0 0.0
  %2100 = vmatpush2.msra.mxu0 0.0
  %2101 = vmatprep.subr.mxu0 0.0
  %2102 = vmatpush2.msra.mxu0 0.0
  %2103 = vmatprep.subr.mxu0 0.0
  %2104 = vmatpush2.msra.mxu0 0.0
  %2105 = vmatprep.subr.mxu0 0.0
  %2106 = vmatpush2.msra.mxu0 0.0
  %2107 = vmatprep.mubr.f32.mxu0 0.0
  %2108 = vmatmul.mubr.f32.gmra.mxu0 %v2032
  %v2109 = vpop.f32.mrf.mxu0
  %v2110 = vadd.f32 0.0, %v2109
  %v2111 = vpop.f32.mrf.mxu0
  %v2112 = vadd.f32 0.0, %v2111
  %2113 = vmatprep.mubr.f32.mxu0 0.0
  %2114 = vmatmul.mubr.f32.gmra.mxu0 %v2035
  %v2115 = vpop.f32.mrf.mxu0
  %v2116 = vadd.f32 0.0, %v2115
  %v2117 = vpop.f32.mrf.mxu0
  %v2118 = vadd.f32 0.0, %v2117
  %2119 = vmatprep.mubr.f32.mxu0 0.0
  %2120 = vmatmul.mubr.f32.gmra.mxu0 %v2038
  %v2121 = vpop.f32.mrf.mxu0
  %v2122 = vadd.f32 0.0, %v2121
  %v2123 = vpop.f32.mrf.mxu0
  %v2124 = vadd.f32 0.0, %v2123
  %2125 = vmatprep.mubr.f32.mxu0 0.0
  %2126 = vmatmul.mubr.f32.gmra.mxu0 %v2041
  %v2127 = vpop.f32.mrf.mxu0
  %v2128 = vadd.f32 0.0, %v2127
  %v2129 = vpop.f32.mrf.mxu0
  %v2130 = vadd.f32 0.0, %v2129
  %2131 = vdwg.mxu0
  %v2132 = vadd.f32 %v1520, %v2110
  %v2133 = vadd.f32 %v1521, %v2112
  %v2134 = vadd.f32 %v1522, %v2116
  %v2135 = vadd.f32 %v1523, %v2118
  %v2136 = vadd.f32 %v1524, %v2122
  %v2137 = vadd.f32 %v1525, %v2124
  %v2138 = vadd.f32 %v1526, %v2128
  %v2139 = vadd.f32 %v1527, %v2130
  %v2140 = vld [vmem:[%s17] sm:$0xf]
  %v2141 = vld [vmem:[%s18] sm:$0xf]
  %2143 = vset.pattern.permute.xlu0 0
  %2144 = vperm.xlu0 %2143, %v2141
  %v2145 = vpop.permute.xlu0 %2144
  %v2148 = vsel %vm150, %v2140, 0
  %2150 = vmatprep.subr.mxu0 0.0
  %2151 = vmatpush1.msra.mxu0 0.0
  %2152 = vmatprep.subr.mxu0 0.0
  %2153 = vmatpush1.msra.mxu0 0.0
  %2154 = vmatprep.subr.mxu0 0.0
  %2155 = vmatpush1.msra.mxu0 0.0
  %2156 = vmatprep.subr.mxu0 0.0
  %2157 = vmatpush1.msra.mxu0 0.0
  %2158 = vmatprep.subr.mxu0 0.0
  %2159 = vmatpush1.msra.mxu0 0.0
  %2160 = vmatprep.subr.mxu0 0.0
  %2161 = vmatpush1.msra.mxu0 0.0
  %2162 = vmatprep.subr.mxu0 0.0
  %2163 = vmatpush1.msra.mxu0 0.0
  %2164 = vmatprep.subr.mxu0 0.0
  %2165 = vmatpush1.msra.mxu0 0.0
  %2166 = vmatprep.subr.mxu0 0.0
  %2167 = vmatpush1.msra.mxu0 0.0
  %2168 = vmatprep.subr.mxu0 0.0
  %2169 = vmatpush1.msra.mxu0 0.0
  %2170 = vmatprep.subr.mxu0 0.0
  %2171 = vmatpush1.msra.mxu0 0.0
  %2172 = vmatprep.subr.mxu0 0.0
  %2173 = vmatpush1.msra.mxu0 0.0
  %2174 = vmatprep.subr.mxu0 %v2139
  %2175 = vmatpush1.msra.mxu0 %v2138
  %2176 = vmatprep.subr.mxu0 %v2137
  %2177 = vmatpush1.msra.mxu0 %v2136
  %2178 = vmatprep.subr.mxu0 %v2135
  %2179 = vmatpush1.msra.mxu0 %v2134
  %2180 = vmatprep.subr.mxu0 %v2133
  %2181 = vmatpush1.msra.mxu0 %v2132
  %2182 = vmatprep.subr.mxu0 0.0
  %2183 = vmatpush2.msra.mxu0 0.0
  %2184 = vmatprep.subr.mxu0 0.0
  %2185 = vmatpush2.msra.mxu0 0.0
  %2186 = vmatprep.subr.mxu0 0.0
  %2187 = vmatpush2.msra.mxu0 0.0
  %2188 = vmatprep.subr.mxu0 0.0
  %2189 = vmatpush2.msra.mxu0 0.0
  %2190 = vmatprep.subr.mxu0 0.0
  %2191 = vmatpush2.msra.mxu0 0.0
  %2192 = vmatprep.subr.mxu0 0.0
  %2193 = vmatpush2.msra.mxu0 0.0
  %2194 = vmatprep.subr.mxu0 0.0
  %2195 = vmatpush2.msra.mxu0 0.0
  %2196 = vmatprep.subr.mxu0 0.0
  %2197 = vmatpush2.msra.mxu0 0.0
  %2198 = vmatprep.subr.mxu0 0.0
  %2199 = vmatpush2.msra.mxu0 0.0
  %2200 = vmatprep.subr.mxu0 0.0
  %2201 = vmatpush2.msra.mxu0 0.0
  %2202 = vmatprep.subr.mxu0 0.0
  %2203 = vmatpush2.msra.mxu0 0.0
  %2204 = vmatprep.subr.mxu0 0.0
  %2205 = vmatpush2.msra.mxu0 0.0
  %2206 = vmatprep.subr.mxu0 0.0
  %2207 = vmatpush2.msra.mxu0 0.0
  %2208 = vmatprep.subr.mxu0 0.0
  %2209 = vmatpush2.msra.mxu0 0.0
  %2210 = vmatprep.subr.mxu0 0.0
  %2211 = vmatpush2.msra.mxu0 0.0
  %2212 = vmatprep.subr.mxu0 0.0
  %2213 = vmatpush2.msra.mxu0 0.0
  %2214 = vmatprep.mubr.f32.mxu0 0.0
  %2215 = vmatmul.mubr.f32.gmra.mxu0 %v2148
  %v2216 = vpop.f32.mrf.mxu0
  %v2217 = vadd.f32 %v2145, %v2216
  %v2218 = vpop.f32.mrf.mxu0
  %v2219 = vadd.f32 %v2145, %v2218
  %2220 = vdwg.mxu0
  %v2223 = vcombine.low %v2217, %v2219
  %s2225 = scalar_lea.vmem %s19, 8
  %2226 = vst [vmem:[%s2225] sm:$0xff] %v2223
  // Predicated region
  $region78: #{forward.3} parent=0 // pred_check
    _
  $region79: #{forward.3} parent=0 // pred_check_branch
    %2228 = sbr.rel (0) target = $region81
  $region80: #{forward.3} parent=0 // pred_region
    _
  $region81: #{forward.3} parent=0 // pred_fallthru
    _
  // Predicated region
  $region82: #{forward.3} parent=0 // pred_check
    _
  $region83: #{forward.3} parent=0 // pred_check_branch
    %2230 = sbr.rel (0) target = $region85
  $region84: #{forward.3} parent=0 // pred_region
    _
  $region85: #{forward.3} parent=0 // pred_fallthru
    _
  // Predicated region
  $region86: #{forward.3} parent=0 // pred_check
    _
  $region87: #{forward.3} parent=0 // pred_check_branch
    %2232 = sbr.rel (0) target = $region89
  $region88: #{forward.3} parent=0 // pred_region
    _
  $region89: #{forward.3} parent=0 // pred_fallthru
    _
  // Predicated region
  $region90: #{forward.3} parent=0 // pred_check
    _
  $region91: #{forward.3} parent=0 // pred_check_branch
    %2234 = sbr.rel (0) target = $region93
  $region92: #{forward.3} parent=0 // pred_region
    _
  $region93: #{forward.3} parent=0 // pred_fallthru
    _

</llo_original>
